<compile_context>
chip_gen: v7x
topology: tpu7x:2x2x1
jax: 0.10.0
libtpu: 0.0.40
codegen_flags: <defaults>
</compile_context>

<pallas_src>
import functools

import jax
import jax.numpy as jnp
from jax.experimental import pallas as pl
from jax.experimental.pallas import tpu as pltpu

_VMEM_LIMIT_BYTES = 40 * 1024 * 1024   # comfortably below v7x's 64 MiB / TC


def _round_up(x, m):
    return ((x + m - 1) // m) * m


def _linear_init_kernel(theta0, feat_ref, diag0_ref, wt_ref, b_ref, h_ref):
    """h0 = (theta0 * feat * diag[0]) @ W^T + b on one (tm, Fp) row tile."""
    x = (theta0 * feat_ref[...]) * diag0_ref[...]
    h_ref[...] = (jnp.dot(x, wt_ref[...], preferred_element_type=jnp.float32)
                  + b_ref[...])


def _poly_step_kernel(theta_k,
                      adj_ref, featc_ref, dinvc_ref, featr_ref, dinvr_ref,
                      diagk_ref, hin_ref, feat_out_ref, h_out_ref, acc_ref):
    """One polynomial step, tiled over (row tiles i, column tiles j):
         agg      = adj @ (feat * Dinv)        (accumulated over j in VMEM)
         feat_new = feat - (agg * Dinv) * diag[k]
         h_new    = h + theta[k] * feat_new
    """
    j = pl.program_id(1)

    @pl.when(j == 0)
    def _init():
        acc_ref[...] = jnp.zeros_like(acc_ref)

    # adj arrives as bf16 (exact for {0,1}); promote so the MXU accumulates
    # the product in f32, matching the f32 reference.
    x = featc_ref[...] * dinvc_ref[...]                       # (tk, Fp) f32
    acc_ref[...] += jnp.dot(adj_ref[...].astype(jnp.float32), x,
                            preferred_element_type=jnp.float32)

    @pl.when(j == pl.num_programs(1) - 1)
    def _finalize():
        feat_new = (featr_ref[...]
                    - (acc_ref[...] * dinvr_ref[...]) * diagk_ref[...])
        feat_out_ref[...] = feat_new
        h_out_ref[...] = hin_ref[...] + theta_k * feat_new


@functools.partial(jax.jit, static_argnames=("theta",))
def poly_conv(feat, adj, learnable_diag, lin_w, lin_b, *, theta):
    """PolyConv forward. feat [N, F]; adj [N, N] with adj[i, j]=1 iff edge j->i."""
    theta = tuple(float(t) for t in theta)
    n, f_in = feat.shape
    f_out = lin_w.shape[0]

    # ---- TPU-friendly padded shapes --------------------------------------
    fp = _round_up(max(f_in, f_out), 128)          # lane-dense feature dim
    np128 = _round_up(n, 128)
    if np128 <= 512:                               # whole problem is one tile
        np_pad, tm, tk = np128, np128, np128
    else:                                          # tiled / pipelined path
        np_pad, tm, tk = _round_up(n, 512), 512, 512
    gm, gk = np_pad // tm, np_pad // tk

    f32 = jnp.float32
    feat_p = jnp.zeros((np_pad, fp), f32).at[:n, :f_in].set(feat.astype(f32))
    adj_f32 = jnp.zeros((np_pad, np_pad), f32).at[:n, :n].set(adj.astype(f32))
    # D^-1/2 precomputed once in the wrapper (padded rows: deg 0 -> clamp -> 1).
    deg = jnp.sum(adj_f32, axis=1, keepdims=True)
    dinv = jax.lax.rsqrt(jnp.maximum(deg, 1.0))                  # (Np, 1) f32
    adj_bf16 = adj_f32.astype(jnp.bfloat16)        # exact: values are 0 / 1
    diag_p = jnp.zeros((learnable_diag.shape[0], fp), f32
                       ).at[:, :f_in].set(learnable_diag.astype(f32))
    wt_p = jnp.zeros((fp, fp), f32).at[:f_in, :f_out].set(lin_w.astype(f32).T)
    b_p = jnp.zeros((1, fp), f32).at[0, :f_out].set(
        lin_b.reshape(-1).astype(f32))

    # ---- h0 = linear(theta0 * feat * diag0) -------------------------------
    h = pl.pallas_call(
        functools.partial(_linear_init_kernel, theta[0]),
        grid=(gm,),
        out_shape=jax.ShapeDtypeStruct((np_pad, fp), f32),
        in_specs=[
            pl.BlockSpec((tm, fp), lambda i: (i, 0)),    # feat rows
            pl.BlockSpec((1, fp), lambda i: (0, 0)),     # diag[0]
            pl.BlockSpec((fp, fp), lambda i: (0, 0)),    # W^T (pre-transposed)
            pl.BlockSpec((1, fp), lambda i: (0, 0)),     # bias
        ],
        out_specs=pl.BlockSpec((tm, fp), lambda i: (i, 0)),
        compiler_params=pltpu.CompilerParams(
            dimension_semantics=("parallel",),
            vmem_limit_bytes=_VMEM_LIMIT_BYTES),
    )(feat_p, diag_p[0:1], wt_p, b_p)

    # ---- polynomial recursion: one tiled pallas_call per step k -----------
    step_cost = pl.CostEstimate(
        flops=2 * np_pad * np_pad * fp + 6 * np_pad * fp,
        transcendentals=0,
        bytes_accessed=(np_pad * np_pad * 2                 # adj (bf16)
                        + (gm + 4) * np_pad * fp * 4        # feat / h streams
                        + (gm + 1) * np_pad * 4))           # dinv

    f_cur = feat_p
    for k in range(1, len(theta)):
        f_cur, h = pl.pallas_call(
            functools.partial(_poly_step_kernel, theta[k]),
            grid=(gm, gk),
            out_shape=(jax.ShapeDtypeStruct((np_pad, fp), f32),
                       jax.ShapeDtypeStruct((np_pad, fp), f32)),
            in_specs=[
                pl.BlockSpec((tm, tk), lambda i, j: (i, j)),   # adj tile (bf16)
                pl.BlockSpec((tk, fp), lambda i, j: (j, 0)),   # feat (column blk)
                pl.BlockSpec((tk, 1), lambda i, j: (j, 0)),    # dinv (column blk)
                pl.BlockSpec((tm, fp), lambda i, j: (i, 0)),   # feat (row blk)
                pl.BlockSpec((tm, 1), lambda i, j: (i, 0)),    # dinv (row blk)
                pl.BlockSpec((1, fp), lambda i, j: (0, 0)),    # diag[k]
                pl.BlockSpec((tm, fp), lambda i, j: (i, 0)),   # h in
            ],
            out_specs=(pl.BlockSpec((tm, fp), lambda i, j: (i, 0)),   # feat out
                       pl.BlockSpec((tm, fp), lambda i, j: (i, 0))),  # h out
            scratch_shapes=[pltpu.VMEM((tm, fp), f32)],               # agg acc
            compiler_params=pltpu.CompilerParams(
                dimension_semantics=("parallel", "arbitrary"),
                vmem_limit_bytes=_VMEM_LIMIT_BYTES),
            cost_estimate=step_cost,
        )(adj_bf16, f_cur, dinv, f_cur, dinv, diag_p[k:k + 1], h)

    return h[:n, :f_out]


def poly_conv_ref(feat, adj, diag, w, b, theta):
    """Pure-JAX reference mirroring the PyTorch forward (f32 throughout)."""
    hp = jax.lax.Precision.HIGHEST
    deg = jnp.sum(adj, axis=1, keepdims=True)
    d_invsqrt = jnp.power(jnp.maximum(deg, 1.0), -0.5)
    h = theta[0] * feat
    h = h * diag[0]
    h = jnp.dot(h, w.T, precision=hp) + b
    f = feat
    for k in range(1, len(theta)):
        agg = jnp.dot(adj, f * d_invsqrt, precision=hp)
        f = f - (agg * d_invsqrt) * diag[k]
        h = h + theta[k] * f
    return h


if __name__ == "__main__":
    theta = (1.0, 0.5, 0.25)          # K = 3 (learnable_diag has 3 rows)

    def make_case(key, n, f):
        k_feat, k_adj, k_diag, k_w = jax.random.split(key, 4)
        feat = jax.random.normal(k_feat, (n, f), dtype=jnp.float32)
        adj = (jax.random.uniform(k_adj, (n, n)) < 0.3).astype(jnp.float32)
        diag = jax.random.uniform(k_diag, (3, f), dtype=jnp.float32)
        limit = (6.0 / (f + f)) ** 0.5              # xavier_uniform_
        w = jax.random.uniform(k_w, (f, f), dtype=jnp.float32,
                               minval=-limit, maxval=limit)
        b = jnp.zeros((f,), dtype=jnp.float32)      # init.zeros_
        return feat, adj, diag, w, b

    key = jax.random.PRNGKey(0)
    k_small, k_big = jax.random.split(key)

    # Small case consistent with the module (N=16 nodes, in_feats=out_feats=32).
    feat, adj, diag, w, b = make_case(k_small, 16, 32)
    out = jax.block_until_ready(poly_conv(feat, adj, diag, w, b, theta=theta))
    ref = poly_conv_ref(feat, adj, diag, w, b, theta)
    assert out.shape == (16, 32)
    assert jnp.allclose(out, ref, rtol=1e-5, atol=1e-5), "mismatch (small case)"

    # Larger case that exercises the tiled multi-block grid + accumulator path.
    feat, adj, diag, w, b = make_case(k_big, 520, 32)
    out = jax.block_until_ready(poly_conv(feat, adj, diag, w, b, theta=theta))
    ref = poly_conv_ref(feat, adj, diag, w, b, theta)
    assert out.shape == (520, 32)
    assert jnp.allclose(out, ref, rtol=1e-4, atol=1e-4), "mismatch (tiled case)"

    print("KERNEL_OK")
</pallas_src>

<mosaic_0001>
module attributes {stable_mosaic.version = 11 : i64} {
  func.func @_poly_step_kernel(%arg0: i32, %arg1: i32, %arg2: memref<128x128xbf16, #tpu.memory_space<vmem>>, %arg3: memref<128x128xf32, #tpu.memory_space<vmem>>, %arg4: memref<128x1xf32, #tpu.memory_space<vmem>>, %arg5: memref<128x128xf32, #tpu.memory_space<vmem>>, %arg6: memref<128x1xf32, #tpu.memory_space<vmem>>, %arg7: memref<1x128xf32, #tpu.memory_space<vmem>>, %arg8: memref<128x128xf32, #tpu.memory_space<vmem>>, %arg9: memref<128x128xf32, #tpu.memory_space<vmem>>, %arg10: memref<128x128xf32, #tpu.memory_space<vmem>>, %arg11: memref<128x128xf32, #tpu.memory_space<vmem>>) attributes {dimension_semantics = [#tpu.dimension_semantics<parallel>, #tpu.dimension_semantics<arbitrary>], iteration_bounds = array<i64: 1, 1>, scalar_prefetch = 0 : i64, scratch_operands = 1 : i64, tpu.core_type = #tpu.core_type<tc>, window_params = [{transform_indices = @transform_0, window_bounds = array<i64: 128, 128>}, {transform_indices = @transform_1, window_bounds = array<i64: 128, 128>}, {transform_indices = @transform_2, window_bounds = array<i64: 128, 1>}, {transform_indices = @transform_3, window_bounds = array<i64: 128, 128>}, {transform_indices = @transform_4, window_bounds = array<i64: 128, 1>}, {pipeline_mode = #tpu.pipeline_mode<synchronous>, transform_indices = @transform_5, window_bounds = array<i64: 1, 128>}, {transform_indices = @transform_6, window_bounds = array<i64: 128, 128>}, {transform_indices = @transform_7, window_bounds = array<i64: 128, 128>}, {transform_indices = @transform_8, window_bounds = array<i64: 128, 128>}]} {
    %c0_i32 = arith.constant 0 : i32
    %0 = arith.cmpi eq, %arg1, %c0_i32 : i32
    %1 = arith.extui %0 : i1 to i32
    %c0_i32_0 = arith.constant 0 : i32
    %2 = arith.cmpi ne, %1, %c0_i32_0 : i32
    scf.if %2 {
      %cst_12 = arith.constant 0.000000e+00 : f32
      %16 = vector.broadcast %cst_12 : f32 to vector<128x128xf32>
      %c0_13 = arith.constant 0 : index
      %c0_14 = arith.constant 0 : index
      %17 = vector.load %arg11[%c0_13, %c0_14] : memref<128x128xf32, #tpu.memory_space<vmem>>, vector<128x128xf32>
      tpu.vector_store %arg11[%c0_13, %c0_14], %16 {strides = array<i32>} : memref<128x128xf32, #tpu.memory_space<vmem>>, vector<128x128xf32>,
    } else {
    }
    %c0 = arith.constant 0 : index
    %c0_1 = arith.constant 0 : index
    %3 = vector.load %arg3[%c0, %c0_1] : memref<128x128xf32, #tpu.memory_space<vmem>>, vector<128x128xf32>
    %c0_2 = arith.constant 0 : index
    %c0_3 = arith.constant 0 : index
    %4 = vector.load %arg4[%c0_2, %c0_3] : memref<128x1xf32, #tpu.memory_space<vmem>>, vector<128x1xf32>
    %5 = vector.broadcast %4 : vector<128x1xf32> to vector<128x128xf32>
    %6 = arith.mulf %3, %5 : vector<128x128xf32>
    %c0_4 = arith.constant 0 : index
    %c0_5 = arith.constant 0 : index
    %7 = vector.load %arg11[%c0_4, %c0_5] : memref<128x128xf32, #tpu.memory_space<vmem>>, vector<128x128xf32>
    %c0_6 = arith.constant 0 : index
    %c0_7 = arith.constant 0 : index
    %8 = vector.load %arg2[%c0_6, %c0_7] : memref<128x128xbf16, #tpu.memory_space<vmem>>, vector<128x128xbf16>
    %9 = arith.extf %8 : vector<128x128xbf16> to vector<128x128xf32>
    %cst = arith.constant dense<0.000000e+00> : vector<128x128xf32>
    %10 = tpu.matmul %9, %6, %cst {dimension_numbers = #tpu.dot_dimension_numbers<[1], [0], [0], [1], [0, 0, 1, 1], [], []>} : vector<128x128xf32>, vector<128x128xf32>, vector<128x128xf32> -> vector<128x128xf32>
    %11 = arith.addf %7, %10 : vector<128x128xf32>
    %c0_8 = arith.constant 0 : index
    %c0_9 = arith.constant 0 : index
    %12 = vector.load %arg11[%c0_8, %c0_9] : memref<128x128xf32, #tpu.memory_space<vmem>>, vector<128x128xf32>
    tpu.vector_store %arg11[%c0_8, %c0_9], %11 {strides = array<i32>} : memref<128x128xf32, #tpu.memory_space<vmem>>, vector<128x128xf32>,
    %c0_i32_10 = arith.constant 0 : i32
    %13 = arith.cmpi eq, %arg1, %c0_i32_10 : i32
    %14 = arith.extui %13 : i1 to i32
    %c0_i32_11 = arith.constant 0 : i32
    %15 = arith.cmpi ne, %14, %c0_i32_11 : i32
    scf.if %15 {
      %c0_12 = arith.constant 0 : index
      %c0_13 = arith.constant 0 : index
      %16 = vector.load %arg5[%c0_12, %c0_13] : memref<128x128xf32, #tpu.memory_space<vmem>>, vector<128x128xf32>
      %c0_14 = arith.constant 0 : index
      %c0_15 = arith.constant 0 : index
      %17 = vector.load %arg11[%c0_14, %c0_15] : memref<128x128xf32, #tpu.memory_space<vmem>>, vector<128x128xf32>
      %c0_16 = arith.constant 0 : index
      %c0_17 = arith.constant 0 : index
      %18 = vector.load %arg6[%c0_16, %c0_17] : memref<128x1xf32, #tpu.memory_space<vmem>>, vector<128x1xf32>
      %19 = vector.broadcast %18 : vector<128x1xf32> to vector<128x128xf32>
      %20 = arith.mulf %17, %19 : vector<128x128xf32>
      %c0_18 = arith.constant 0 : index
      %c0_19 = arith.constant 0 : index
      %21 = vector.load %arg7[%c0_18, %c0_19] : memref<1x128xf32, #tpu.memory_space<vmem>>, vector<1x128xf32>
      %22 = vector.broadcast %21 : vector<1x128xf32> to vector<128x128xf32>
      %23 = arith.mulf %20, %22 : vector<128x128xf32>
      %24 = arith.subf %16, %23 : vector<128x128xf32>
      %c0_20 = arith.constant 0 : index
      %c0_21 = arith.constant 0 : index
      %25 = vector.load %arg9[%c0_20, %c0_21] : memref<128x128xf32, #tpu.memory_space<vmem>>, vector<128x128xf32>
      tpu.vector_store %arg9[%c0_20, %c0_21], %24 {strides = array<i32>} : memref<128x128xf32, #tpu.memory_space<vmem>>, vector<128x128xf32>,
      %c0_22 = arith.constant 0 : index
      %c0_23 = arith.constant 0 : index
      %26 = vector.load %arg8[%c0_22, %c0_23] : memref<128x128xf32, #tpu.memory_space<vmem>>, vector<128x128xf32>
      %cst_24 = arith.constant 5.000000e-01 : f32
      %27 = vector.broadcast %cst_24 : f32 to vector<128x128xf32>
      %28 = arith.mulf %27, %24 : vector<128x128xf32>
      %29 = arith.addf %26, %28 : vector<128x128xf32>
      %c0_25 = arith.constant 0 : index
      %c0_26 = arith.constant 0 : index
      %30 = vector.load %arg10[%c0_25, %c0_26] : memref<128x128xf32, #tpu.memory_space<vmem>>, vector<128x128xf32>
      tpu.vector_store %arg10[%c0_25, %c0_26], %29 {strides = array<i32>} : memref<128x128xf32, #tpu.memory_space<vmem>>, vector<128x128xf32>,
    } else {
    }
    return
  }
  func.func @transform_0(%arg0: i32, %arg1: i32) -> (i32, i32) {
    %c0_i32 = arith.constant 0 : i32
    return %arg0, %arg1 : i32, i32
  }
  func.func @transform_1(%arg0: i32, %arg1: i32) -> (i32, i32) {
    %c0_i32 = arith.constant 0 : i32
    %c0_i32_0 = arith.constant 0 : i32
    return %arg1, %c0_i32 : i32, i32
  }
  func.func @transform_2(%arg0: i32, %arg1: i32) -> (i32, i32) {
    %c0_i32 = arith.constant 0 : i32
    %c0_i32_0 = arith.constant 0 : i32
    return %arg1, %c0_i32 : i32, i32
  }
  func.func @transform_3(%arg0: i32, %arg1: i32) -> (i32, i32) {
    %c0_i32 = arith.constant 0 : i32
    %c0_i32_0 = arith.constant 0 : i32
    return %arg0, %c0_i32 : i32, i32
  }
  func.func @transform_4(%arg0: i32, %arg1: i32) -> (i32, i32) {
    %c0_i32 = arith.constant 0 : i32
    %c0_i32_0 = arith.constant 0 : i32
    return %arg0, %c0_i32 : i32, i32
  }
  func.func @transform_5(%arg0: i32, %arg1: i32) -> (i32, i32) {
    %c0_i32 = arith.constant 0 : i32
    %c0_i32_0 = arith.constant 0 : i32
    %c0_i32_1 = arith.constant 0 : i32
    return %c0_i32, %c0_i32_0 : i32, i32
  }
  func.func @transform_6(%arg0: i32, %arg1: i32) -> (i32, i32) {
    %c0_i32 = arith.constant 0 : i32
    %c0_i32_0 = arith.constant 0 : i32
    return %arg0, %c0_i32 : i32, i32
  }
  func.func @transform_7(%arg0: i32, %arg1: i32) -> (i32, i32) {
    %c0_i32 = arith.constant 0 : i32
    %c0_i32_0 = arith.constant 0 : i32
    return %arg0, %c0_i32 : i32, i32
  }
  func.func @transform_8(%arg0: i32, %arg1: i32) -> (i32, i32) {
    %c0_i32 = arith.constant 0 : i32
    %c0_i32_0 = arith.constant 0 : i32
    return %arg0, %c0_i32 : i32, i32
  }
}

module attributes {stable_mosaic.version = 11 : i64} {
  func.func @_linear_init_kernel(%arg0: i32, %arg1: memref<128x128xf32, #tpu.memory_space<vmem>>, %arg2: memref<1x128xf32, #tpu.memory_space<vmem>>, %arg3: memref<128x128xf32, #tpu.memory_space<vmem>>, %arg4: memref<1x128xf32, #tpu.memory_space<vmem>>, %arg5: memref<128x128xf32, #tpu.memory_space<vmem>>) attributes {dimension_semantics = [#tpu.dimension_semantics<parallel>], iteration_bounds = array<i64: 1>, scalar_prefetch = 0 : i64, scratch_operands = 0 : i64, tpu.core_type = #tpu.core_type<tc>, window_params = [{transform_indices = @transform_0, window_bounds = array<i64: 128, 128>}, {pipeline_mode = #tpu.pipeline_mode<synchronous>, transform_indices = @transform_1, window_bounds = array<i64: 1, 128>}, {pipeline_mode = #tpu.pipeline_mode<synchronous>, transform_indices = @transform_2, window_bounds = array<i64: 128, 128>}, {pipeline_mode = #tpu.pipeline_mode<synchronous>, transform_indices = @transform_3, window_bounds = array<i64: 1, 128>}, {transform_indices = @transform_4, window_bounds = array<i64: 128, 128>}]} {
    %c0 = arith.constant 0 : index
    %c0_0 = arith.constant 0 : index
    %0 = vector.load %arg1[%c0, %c0_0] : memref<128x128xf32, #tpu.memory_space<vmem>>, vector<128x128xf32>
    %cst = arith.constant 1.000000e+00 : f32
    %1 = vector.broadcast %cst : f32 to vector<128x128xf32>
    %2 = arith.mulf %1, %0 : vector<128x128xf32>
    %c0_1 = arith.constant 0 : index
    %c0_2 = arith.constant 0 : index
    %3 = vector.load %arg2[%c0_1, %c0_2] : memref<1x128xf32, #tpu.memory_space<vmem>>, vector<1x128xf32>
    %4 = vector.broadcast %3 : vector<1x128xf32> to vector<128x128xf32>
    %5 = arith.mulf %2, %4 : vector<128x128xf32>
    %c0_3 = arith.constant 0 : index
    %c0_4 = arith.constant 0 : index
    %6 = vector.load %arg3[%c0_3, %c0_4] : memref<128x128xf32, #tpu.memory_space<vmem>>, vector<128x128xf32>
    %cst_5 = arith.constant dense<0.000000e+00> : vector<128x128xf32>
    %7 = tpu.matmul %5, %6, %cst_5 {dimension_numbers = #tpu.dot_dimension_numbers<[1], [0], [0], [1], [0, 0, 1, 1], [], []>} : vector<128x128xf32>, vector<128x128xf32>, vector<128x128xf32> -> vector<128x128xf32>
    %c0_6 = arith.constant 0 : index
    %c0_7 = arith.constant 0 : index
    %8 = vector.load %arg4[%c0_6, %c0_7] : memref<1x128xf32, #tpu.memory_space<vmem>>, vector<1x128xf32>
    %9 = vector.broadcast %8 : vector<1x128xf32> to vector<128x128xf32>
    %10 = arith.addf %7, %9 : vector<128x128xf32>
    %c0_8 = arith.constant 0 : index
    %c0_9 = arith.constant 0 : index
    %11 = vector.load %arg5[%c0_8, %c0_9] : memref<128x128xf32, #tpu.memory_space<vmem>>, vector<128x128xf32>
    tpu.vector_store %arg5[%c0_8, %c0_9], %10 {strides = array<i32>} : memref<128x128xf32, #tpu.memory_space<vmem>>, vector<128x128xf32>,
    return
  }
  func.func @transform_0(%arg0: i32) -> (i32, i32) {
    %c0_i32 = arith.constant 0 : i32
    %c0_i32_0 = arith.constant 0 : i32
    return %arg0, %c0_i32 : i32, i32
  }
  func.func @transform_1(%arg0: i32) -> (i32, i32) {
    %c0_i32 = arith.constant 0 : i32
    %c0_i32_0 = arith.constant 0 : i32
    %c0_i32_1 = arith.constant 0 : i32
    return %c0_i32, %c0_i32_0 : i32, i32
  }
  func.func @transform_2(%arg0: i32) -> (i32, i32) {
    %c0_i32 = arith.constant 0 : i32
    %c0_i32_0 = arith.constant 0 : i32
    %c0_i32_1 = arith.constant 0 : i32
    return %c0_i32, %c0_i32_0 : i32, i32
  }
  func.func @transform_3(%arg0: i32) -> (i32, i32) {
    %c0_i32 = arith.constant 0 : i32
    %c0_i32_0 = arith.constant 0 : i32
    %c0_i32_1 = arith.constant 0 : i32
    return %c0_i32, %c0_i32_0 : i32, i32
  }
  func.func @transform_4(%arg0: i32) -> (i32, i32) {
    %c0_i32 = arith.constant 0 : i32
    %c0_i32_0 = arith.constant 0 : i32
    return %arg0, %c0_i32 : i32, i32
  }
}

module attributes {stable_mosaic.version = 11 : i64} {
  func.func @_poly_step_kernel(%arg0: i32, %arg1: i32, %arg2: memref<128x128xbf16, #tpu.memory_space<vmem>>, %arg3: memref<128x128xf32, #tpu.memory_space<vmem>>, %arg4: memref<128x1xf32, #tpu.memory_space<vmem>>, %arg5: memref<128x128xf32, #tpu.memory_space<vmem>>, %arg6: memref<128x1xf32, #tpu.memory_space<vmem>>, %arg7: memref<1x128xf32, #tpu.memory_space<vmem>>, %arg8: memref<128x128xf32, #tpu.memory_space<vmem>>, %arg9: memref<128x128xf32, #tpu.memory_space<vmem>>, %arg10: memref<128x128xf32, #tpu.memory_space<vmem>>, %arg11: memref<128x128xf32, #tpu.memory_space<vmem>>) attributes {dimension_semantics = [#tpu.dimension_semantics<parallel>, #tpu.dimension_semantics<arbitrary>], iteration_bounds = array<i64: 1, 1>, scalar_prefetch = 0 : i64, scratch_operands = 1 : i64, tpu.core_type = #tpu.core_type<tc>, window_params = [{transform_indices = @transform_0, window_bounds = array<i64: 128, 128>}, {transform_indices = @transform_1, window_bounds = array<i64: 128, 128>}, {transform_indices = @transform_2, window_bounds = array<i64: 128, 1>}, {transform_indices = @transform_3, window_bounds = array<i64: 128, 128>}, {transform_indices = @transform_4, window_bounds = array<i64: 128, 1>}, {pipeline_mode = #tpu.pipeline_mode<synchronous>, transform_indices = @transform_5, window_bounds = array<i64: 1, 128>}, {transform_indices = @transform_6, window_bounds = array<i64: 128, 128>}, {transform_indices = @transform_7, window_bounds = array<i64: 128, 128>}, {transform_indices = @transform_8, window_bounds = array<i64: 128, 128>}]} {
    %c0_i32 = arith.constant 0 : i32
    %0 = arith.cmpi eq, %arg1, %c0_i32 : i32
    %1 = arith.extui %0 : i1 to i32
    %c0_i32_0 = arith.constant 0 : i32
    %2 = arith.cmpi ne, %1, %c0_i32_0 : i32
    scf.if %2 {
      %cst_12 = arith.constant 0.000000e+00 : f32
      %16 = vector.broadcast %cst_12 : f32 to vector<128x128xf32>
      %c0_13 = arith.constant 0 : index
      %c0_14 = arith.constant 0 : index
      %17 = vector.load %arg11[%c0_13, %c0_14] : memref<128x128xf32, #tpu.memory_space<vmem>>, vector<128x128xf32>
      tpu.vector_store %arg11[%c0_13, %c0_14], %16 {strides = array<i32>} : memref<128x128xf32, #tpu.memory_space<vmem>>, vector<128x128xf32>,
    } else {
    }
    %c0 = arith.constant 0 : index
    %c0_1 = arith.constant 0 : index
    %3 = vector.load %arg3[%c0, %c0_1] : memref<128x128xf32, #tpu.memory_space<vmem>>, vector<128x128xf32>
    %c0_2 = arith.constant 0 : index
    %c0_3 = arith.constant 0 : index
    %4 = vector.load %arg4[%c0_2, %c0_3] : memref<128x1xf32, #tpu.memory_space<vmem>>, vector<128x1xf32>
    %5 = vector.broadcast %4 : vector<128x1xf32> to vector<128x128xf32>
    %6 = arith.mulf %3, %5 : vector<128x128xf32>
    %c0_4 = arith.constant 0 : index
    %c0_5 = arith.constant 0 : index
    %7 = vector.load %arg11[%c0_4, %c0_5] : memref<128x128xf32, #tpu.memory_space<vmem>>, vector<128x128xf32>
    %c0_6 = arith.constant 0 : index
    %c0_7 = arith.constant 0 : index
    %8 = vector.load %arg2[%c0_6, %c0_7] : memref<128x128xbf16, #tpu.memory_space<vmem>>, vector<128x128xbf16>
    %9 = arith.extf %8 : vector<128x128xbf16> to vector<128x128xf32>
    %cst = arith.constant dense<0.000000e+00> : vector<128x128xf32>
    %10 = tpu.matmul %9, %6, %cst {dimension_numbers = #tpu.dot_dimension_numbers<[1], [0], [0], [1], [0, 0, 1, 1], [], []>} : vector<128x128xf32>, vector<128x128xf32>, vector<128x128xf32> -> vector<128x128xf32>
    %11 = arith.addf %7, %10 : vector<128x128xf32>
    %c0_8 = arith.constant 0 : index
    %c0_9 = arith.constant 0 : index
    %12 = vector.load %arg11[%c0_8, %c0_9] : memref<128x128xf32, #tpu.memory_space<vmem>>, vector<128x128xf32>
    tpu.vector_store %arg11[%c0_8, %c0_9], %11 {strides = array<i32>} : memref<128x128xf32, #tpu.memory_space<vmem>>, vector<128x128xf32>,
    %c0_i32_10 = arith.constant 0 : i32
    %13 = arith.cmpi eq, %arg1, %c0_i32_10 : i32
    %14 = arith.extui %13 : i1 to i32
    %c0_i32_11 = arith.constant 0 : i32
    %15 = arith.cmpi ne, %14, %c0_i32_11 : i32
    scf.if %15 {
      %c0_12 = arith.constant 0 : index
      %c0_13 = arith.constant 0 : index
      %16 = vector.load %arg5[%c0_12, %c0_13] : memref<128x128xf32, #tpu.memory_space<vmem>>, vector<128x128xf32>
      %c0_14 = arith.constant 0 : index
      %c0_15 = arith.constant 0 : index
      %17 = vector.load %arg11[%c0_14, %c0_15] : memref<128x128xf32, #tpu.memory_space<vmem>>, vector<128x128xf32>
      %c0_16 = arith.constant 0 : index
      %c0_17 = arith.constant 0 : index
      %18 = vector.load %arg6[%c0_16, %c0_17] : memref<128x1xf32, #tpu.memory_space<vmem>>, vector<128x1xf32>
      %19 = vector.broadcast %18 : vector<128x1xf32> to vector<128x128xf32>
      %20 = arith.mulf %17, %19 : vector<128x128xf32>
      %c0_18 = arith.constant 0 : index
      %c0_19 = arith.constant 0 : index
      %21 = vector.load %arg7[%c0_18, %c0_19] : memref<1x128xf32, #tpu.memory_space<vmem>>, vector<1x128xf32>
      %22 = vector.broadcast %21 : vector<1x128xf32> to vector<128x128xf32>
      %23 = arith.mulf %20, %22 : vector<128x128xf32>
      %24 = arith.subf %16, %23 : vector<128x128xf32>
      %c0_20 = arith.constant 0 : index
      %c0_21 = arith.constant 0 : index
      %25 = vector.load %arg9[%c0_20, %c0_21] : memref<128x128xf32, #tpu.memory_space<vmem>>, vector<128x128xf32>
      tpu.vector_store %arg9[%c0_20, %c0_21], %24 {strides = array<i32>} : memref<128x128xf32, #tpu.memory_space<vmem>>, vector<128x128xf32>,
      %c0_22 = arith.constant 0 : index
      %c0_23 = arith.constant 0 : index
      %26 = vector.load %arg8[%c0_22, %c0_23] : memref<128x128xf32, #tpu.memory_space<vmem>>, vector<128x128xf32>
      %cst_24 = arith.constant 2.500000e-01 : f32
      %27 = vector.broadcast %cst_24 : f32 to vector<128x128xf32>
      %28 = arith.mulf %27, %24 : vector<128x128xf32>
      %29 = arith.addf %26, %28 : vector<128x128xf32>
      %c0_25 = arith.constant 0 : index
      %c0_26 = arith.constant 0 : index
      %30 = vector.load %arg10[%c0_25, %c0_26] : memref<128x128xf32, #tpu.memory_space<vmem>>, vector<128x128xf32>
      tpu.vector_store %arg10[%c0_25, %c0_26], %29 {strides = array<i32>} : memref<128x128xf32, #tpu.memory_space<vmem>>, vector<128x128xf32>,
    } else {
    }
    return
  }
  func.func @transform_0(%arg0: i32, %arg1: i32) -> (i32, i32) {
    %c0_i32 = arith.constant 0 : i32
    return %arg0, %arg1 : i32, i32
  }
  func.func @transform_1(%arg0: i32, %arg1: i32) -> (i32, i32) {
    %c0_i32 = arith.constant 0 : i32
    %c0_i32_0 = arith.constant 0 : i32
    return %arg1, %c0_i32 : i32, i32
  }
  func.func @transform_2(%arg0: i32, %arg1: i32) -> (i32, i32) {
    %c0_i32 = arith.constant 0 : i32
    %c0_i32_0 = arith.constant 0 : i32
    return %arg1, %c0_i32 : i32, i32
  }
  func.func @transform_3(%arg0: i32, %arg1: i32) -> (i32, i32) {
    %c0_i32 = arith.constant 0 : i32
    %c0_i32_0 = arith.constant 0 : i32
    return %arg0, %c0_i32 : i32, i32
  }
  func.func @transform_4(%arg0: i32, %arg1: i32) -> (i32, i32) {
    %c0_i32 = arith.constant 0 : i32
    %c0_i32_0 = arith.constant 0 : i32
    return %arg0, %c0_i32 : i32, i32
  }
  func.func @transform_5(%arg0: i32, %arg1: i32) -> (i32, i32) {
    %c0_i32 = arith.constant 0 : i32
    %c0_i32_0 = arith.constant 0 : i32
    %c0_i32_1 = arith.constant 0 : i32
    return %c0_i32, %c0_i32_0 : i32, i32
  }
  func.func @transform_6(%arg0: i32, %arg1: i32) -> (i32, i32) {
    %c0_i32 = arith.constant 0 : i32
    %c0_i32_0 = arith.constant 0 : i32
    return %arg0, %c0_i32 : i32, i32
  }
  func.func @transform_7(%arg0: i32, %arg1: i32) -> (i32, i32) {
    %c0_i32 = arith.constant 0 : i32
    %c0_i32_0 = arith.constant 0 : i32
    return %arg0, %c0_i32 : i32, i32
  }
  func.func @transform_8(%arg0: i32, %arg1: i32) -> (i32, i32) {
    %c0_i32 = arith.constant 0 : i32
    %c0_i32_0 = arith.constant 0 : i32
    return %arg0, %c0_i32 : i32, i32
  }
}

</mosaic_0001>

<llo_original>
// kernel: poly_conv.3
$region0: #{poly_conv.3}
  #allocation0 [shape = 'u32[]', space=smem, size = 0x4, offset = 0x4, fixed_abs, tag = 'smem constant byte address 0x4 - core index']
  #allocation1 [shape = 'u32[144,128]{1,0:T(1,128)}', space=vmem, size = 0x12000, scoped, tag = 'internal scratch']
  %s0 = inlined_call_operand.vmem [shape: f32[128,128], index: 0, kind: input, shape index: {}]
  %s1 = inlined_call_operand.vmem [shape: f32[1,128], index: 1, kind: input, shape index: {}]
  %s2 = inlined_call_operand.vmem [shape: f32[128,128], index: 2, kind: input, shape index: {}]
  %s3 = inlined_call_operand.vmem [shape: f32[1,128], index: 3, kind: input, shape index: {}]
  %s4 = inlined_call_operand.vmem [shape: f32[128,128], index: 4, kind: output, shape index: {}]
  %s5 = sld [smem:[#allocation0]]
  $region26: #{poly_conv.3} parent=0
    _
  %s7 = ssub.s32 1, %s5
  %s8 = scalar_select 0, %s7, %s5
  // Predicated region
  $region2: #{poly_conv.3} parent=0 // pred_check
    _
  $region3: #{poly_conv.3} parent=0 // pred_check_branch
    %10 = sbr.rel (0) target = $region5
  $region4: #{poly_conv.3} parent=0 // pred_region
    _
  $region5: #{poly_conv.3} parent=0 // pred_fallthru
    _
  // Predicated region
  $region6: #{poly_conv.3} parent=0 // pred_check
    _
  $region7: #{poly_conv.3} parent=0 // pred_check_branch
    %12 = sbr.rel (0) target = $region9
  $region8: #{poly_conv.3} parent=0 // pred_region
    _
  $region9: #{poly_conv.3} parent=0 // pred_fallthru
    _
  // Predicated region
  $region10: #{poly_conv.3} parent=0 // pred_check
    _
  $region11: #{poly_conv.3} parent=0 // pred_check_branch
    %14 = sbr.rel (0) target = $region13
  $region12: #{poly_conv.3} parent=0 // pred_region
    _
  $region13: #{poly_conv.3} parent=0 // pred_fallthru
    _
  // Predicated region
  $region14: #{poly_conv.3} parent=0 // pred_check
    _
  $region15: #{poly_conv.3} parent=0 // pred_check_branch
    %16 = sbr.rel (0) target = $region17
  $region16: #{poly_conv.3} parent=0 // pred_region
    _
  $region17: #{poly_conv.3} parent=0 // pred_fallthru
    _
  %v17 = vld [vmem:[%s0] sm:$0xff]
  %v18 = vld [vmem:[%s0 + $0x8] sm:$0xff]
  %v19 = vld [vmem:[%s0 + $0x10] sm:$0xff]
  %v20 = vld [vmem:[%s0 + $0x18] sm:$0xff]
  %v21 = vld [vmem:[%s0 + $0x20] sm:$0xff]
  %v22 = vld [vmem:[%s0 + $0x28] sm:$0xff]
  %v23 = vld [vmem:[%s0 + $0x30] sm:$0xff]
  %v24 = vld [vmem:[%s0 + $0x38] sm:$0xff]
  %v25 = vld [vmem:[%s0 + $0x40] sm:$0xff]
  %v26 = vld [vmem:[%s0 + $0x48] sm:$0xff]
  %v27 = vld [vmem:[%s0 + $0x50] sm:$0xff]
  %v28 = vld [vmem:[%s0 + $0x58] sm:$0xff]
  %v29 = vld [vmem:[%s0 + $0x60] sm:$0xff]
  %v30 = vld [vmem:[%s0 + $0x68] sm:$0xff]
  %v31 = vld [vmem:[%s0 + $0x70] sm:$0xff]
  %v32 = vld [vmem:[%s0 + $0x78] sm:$0xff]
  %v33 = vld [vmem:[%s1] sm:$0x1]
  %v35 = vlaneseq
  %v36 = vshrl.u32 %v35, 7
  %v37 = vsub.s32 0, %v36
  %v38 = vrot.slane %v33, %v37
  %v40 = vmul.f32 %v17, %v38
  %v41 = vmul.f32 %v18, %v38
  %v42 = vmul.f32 %v19, %v38
  %v43 = vmul.f32 %v20, %v38
  %v44 = vmul.f32 %v21, %v38
  %v45 = vmul.f32 %v22, %v38
  %v46 = vmul.f32 %v23, %v38
  %v47 = vmul.f32 %v24, %v38
  %v48 = vmul.f32 %v25, %v38
  %v49 = vmul.f32 %v26, %v38
  %v50 = vmul.f32 %v27, %v38
  %v51 = vmul.f32 %v28, %v38
  %v52 = vmul.f32 %v29, %v38
  %v53 = vmul.f32 %v30, %v38
  %v54 = vmul.f32 %v31, %v38
  %v55 = vmul.f32 %v32, %v38
  %v56 = vld [vmem:[%s2] sm:$0xff]
  %v57 = vld [vmem:[%s2 + $0x8] sm:$0xff]
  %v58 = vld [vmem:[%s2 + $0x10] sm:$0xff]
  %v59 = vld [vmem:[%s2 + $0x18] sm:$0xff]
  %v60 = vld [vmem:[%s2 + $0x20] sm:$0xff]
  %v61 = vld [vmem:[%s2 + $0x28] sm:$0xff]
  %v62 = vld [vmem:[%s2 + $0x30] sm:$0xff]
  %v63 = vld [vmem:[%s2 + $0x38] sm:$0xff]
  %v64 = vld [vmem:[%s2 + $0x40] sm:$0xff]
  %v65 = vld [vmem:[%s2 + $0x48] sm:$0xff]
  %v66 = vld [vmem:[%s2 + $0x50] sm:$0xff]
  %v67 = vld [vmem:[%s2 + $0x58] sm:$0xff]
  %v68 = vld [vmem:[%s2 + $0x60] sm:$0xff]
  %v69 = vld [vmem:[%s2 + $0x68] sm:$0xff]
  %v70 = vld [vmem:[%s2 + $0x70] sm:$0xff]
  %v71 = vld [vmem:[%s2 + $0x78] sm:$0xff]
  %v72 = vld [vmem:[%s3] sm:$0x1]
  %v74 = vlaneseq
  %v75 = vshrl.u32 %v74, 7
  %v76 = vsub.s32 0, %v75
  %v77 = vrot.slane %v72, %v76
  %79 = vmatprep.subr.mxu0 0.0
  %80 = vmatpush1.msra.mxu0 %v56
  %81 = vmatprep.subr.mxu0 0.0
  %82 = vmatpush1.msra.mxu0 %v57
  %83 = vmatprep.subr.mxu0 0.0
  %84 = vmatpush1.msra.mxu0 %v58
  %85 = vmatprep.subr.mxu0 0.0
  %86 = vmatpush1.msra.mxu0 %v59
  %87 = vmatprep.subr.mxu0 0.0
  %88 = vmatpush1.msra.mxu0 %v60
  %89 = vmatprep.subr.mxu0 0.0
  %90 = vmatpush1.msra.mxu0 %v61
  %91 = vmatprep.subr.mxu0 0.0
  %92 = vmatpush1.msra.mxu0 %v62
  %93 = vmatprep.subr.mxu0 0.0
  %94 = vmatpush1.msra.mxu0 %v63
  %95 = vmatprep.subr.mxu0 0.0
  %96 = vmatpush1.msra.mxu0 %v64
  %97 = vmatprep.subr.mxu0 0.0
  %98 = vmatpush1.msra.mxu0 %v65
  %99 = vmatprep.subr.mxu0 0.0
  %100 = vmatpush1.msra.mxu0 %v66
  %101 = vmatprep.subr.mxu0 0.0
  %102 = vmatpush1.msra.mxu0 %v67
  %103 = vmatprep.subr.mxu0 0.0
  %104 = vmatpush1.msra.mxu0 %v68
  %105 = vmatprep.subr.mxu0 0.0
  %106 = vmatpush1.msra.mxu0 %v69
  %107 = vmatprep.subr.mxu0 0.0
  %108 = vmatpush1.msra.mxu0 %v70
  %109 = vmatprep.subr.mxu0 0.0
  %110 = vmatpush1.msra.mxu0 %v71
  %111 = vmatprep.subr.mxu0 0.0
  %112 = vmatpush1.msra.mxu0 0.0
  %113 = vmatprep.subr.mxu0 0.0
  %114 = vmatpush1.msra.mxu0 0.0
  %115 = vmatprep.subr.mxu0 0.0
  %116 = vmatpush1.msra.mxu0 0.0
  %117 = vmatprep.subr.mxu0 0.0
  %118 = vmatpush1.msra.mxu0 0.0
  %119 = vmatprep.subr.mxu0 0.0
  %120 = vmatpush1.msra.mxu0 0.0
  %121 = vmatprep.subr.mxu0 0.0
  %122 = vmatpush1.msra.mxu0 0.0
  %123 = vmatprep.subr.mxu0 0.0
  %124 = vmatpush1.msra.mxu0 0.0
  %125 = vmatprep.subr.mxu0 0.0
  %126 = vmatpush1.msra.mxu0 0.0
  %127 = vmatprep.subr.mxu0 0.0
  %128 = vmatpush1.msra.mxu0 0.0
  %129 = vmatprep.subr.mxu0 0.0
  %130 = vmatpush1.msra.mxu0 0.0
  %131 = vmatprep.subr.mxu0 0.0
  %132 = vmatpush1.msra.mxu0 0.0
  %133 = vmatprep.subr.mxu0 0.0
  %134 = vmatpush1.msra.mxu0 0.0
  %135 = vmatprep.subr.mxu0 0.0
  %136 = vmatpush1.msra.mxu0 0.0
  %137 = vmatprep.subr.mxu0 0.0
  %138 = vmatpush1.msra.mxu0 0.0
  %139 = vmatprep.subr.mxu0 0.0
  %140 = vmatpush1.msra.mxu0 0.0
  %141 = vmatprep.subr.mxu0 0.0
  %142 = vmatpush1.msra.mxu0 0.0
  %143 = vmatprep.mubr.f32.mxu0 0.0
  %144 = vmatmul.mubr.f32.gmra.mrb[0].mxu0 %v40
  %v145 = vpop.f32.mrb[0].mxu0
  %v146 = vadd.f32 %v77, %v145
  %v147 = vpop.f32.mrb[0].mxu0
  %148 = vmatprep.mubr.f32.mxu0 0.0
  %149 = vmatmul.mubr.f32.gmra.mrb[0].mxu0 %v41
  %v150 = vpop.f32.mrb[0].mxu0
  %v151 = vadd.f32 %v77, %v150
  %v152 = vpop.f32.mrb[0].mxu0
  %153 = vmatprep.mubr.f32.mxu0 0.0
  %154 = vmatmul.mubr.f32.gmra.mrb[0].mxu0 %v42
  %v155 = vpop.f32.mrb[0].mxu0
  %v156 = vadd.f32 %v77, %v155
  %v157 = vpop.f32.mrb[0].mxu0
  %158 = vmatprep.mubr.f32.mxu0 0.0
  %159 = vmatmul.mubr.f32.gmra.mrb[0].mxu0 %v43
  %v160 = vpop.f32.mrb[0].mxu0
  %v161 = vadd.f32 %v77, %v160
  %v162 = vpop.f32.mrb[0].mxu0
  %163 = vmatprep.mubr.f32.mxu0 0.0
  %164 = vmatmul.mubr.f32.gmra.mrb[0].mxu0 %v44
  %v165 = vpop.f32.mrb[0].mxu0
  %v166 = vadd.f32 %v77, %v165
  %v167 = vpop.f32.mrb[0].mxu0
  %168 = vmatprep.mubr.f32.mxu0 0.0
  %169 = vmatmul.mubr.f32.gmra.mrb[0].mxu0 %v45
  %v170 = vpop.f32.mrb[0].mxu0
  %v171 = vadd.f32 %v77, %v170
  %v172 = vpop.f32.mrb[0].mxu0
  %173 = vmatprep.mubr.f32.mxu0 0.0
  %174 = vmatmul.mubr.f32.gmra.mrb[0].mxu0 %v46
  %v175 = vpop.f32.mrb[0].mxu0
  %v176 = vadd.f32 %v77, %v175
  %v177 = vpop.f32.mrb[0].mxu0
  %178 = vmatprep.mubr.f32.mxu0 0.0
  %179 = vmatmul.mubr.f32.gmra.mrb[0].mxu0 %v47
  %v180 = vpop.f32.mrb[0].mxu0
  %v181 = vadd.f32 %v77, %v180
  %v182 = vpop.f32.mrb[0].mxu0
  %183 = vmatprep.mubr.f32.mxu0 0.0
  %184 = vmatmul.mubr.f32.gmra.mrb[0].mxu0 %v48
  %v185 = vpop.f32.mrb[0].mxu0
  %v186 = vadd.f32 %v77, %v185
  %v187 = vpop.f32.mrb[0].mxu0
  %188 = vmatprep.mubr.f32.mxu0 0.0
  %189 = vmatmul.mubr.f32.gmra.mrb[0].mxu0 %v49
  %v190 = vpop.f32.mrb[0].mxu0
  %v191 = vadd.f32 %v77, %v190
  %v192 = vpop.f32.mrb[0].mxu0
  %193 = vmatprep.mubr.f32.mxu0 0.0
  %194 = vmatmul.mubr.f32.gmra.mrb[0].mxu0 %v50
  %v195 = vpop.f32.mrb[0].mxu0
  %v196 = vadd.f32 %v77, %v195
  %v197 = vpop.f32.mrb[0].mxu0
  %198 = vmatprep.mubr.f32.mxu0 0.0
  %199 = vmatmul.mubr.f32.gmra.mrb[0].mxu0 %v51
  %v200 = vpop.f32.mrb[0].mxu0
  %v201 = vadd.f32 %v77, %v200
  %v202 = vpop.f32.mrb[0].mxu0
  %203 = vmatprep.mubr.f32.mxu0 0.0
  %204 = vmatmul.mubr.f32.gmra.mrb[0].mxu0 %v52
  %v205 = vpop.f32.mrb[0].mxu0
  %v206 = vadd.f32 %v77, %v205
  %v207 = vpop.f32.mrb[0].mxu0
  %208 = vmatprep.mubr.f32.mxu0 0.0
  %209 = vmatmul.mubr.f32.gmra.mrb[0].mxu0 %v53
  %v210 = vpop.f32.mrb[0].mxu0
  %v211 = vadd.f32 %v77, %v210
  %v212 = vpop.f32.mrb[0].mxu0
  %213 = vmatprep.mubr.f32.mxu0 0.0
  %214 = vmatmul.mubr.f32.gmra.mrb[0].mxu0 %v54
  %v215 = vpop.f32.mrb[0].mxu0
  %v216 = vadd.f32 %v77, %v215
  %v217 = vpop.f32.mrb[0].mxu0
  %218 = vmatprep.mubr.f32.mxu0 0.0
  %219 = vmatmul.mubr.f32.gmra.mrb[0].mxu0 %v55
  %v220 = vpop.f32.mrb[0].mxu0
  %v221 = vadd.f32 %v77, %v220
  %v222 = vpop.f32.mrb[0].mxu0
  %223 = vdwg.mxu0
  %224 = vst [vmem:[%s4] sm:$0xff] %v146
  %225 = vst [vmem:[%s4 + $0x8] sm:$0xff] %v151
  %226 = vst [vmem:[%s4 + $0x10] sm:$0xff] %v156
  %227 = vst [vmem:[%s4 + $0x18] sm:$0xff] %v161
  %228 = vst [vmem:[%s4 + $0x20] sm:$0xff] %v166
  %229 = vst [vmem:[%s4 + $0x28] sm:$0xff] %v171
  %230 = vst [vmem:[%s4 + $0x30] sm:$0xff] %v176
  %231 = vst [vmem:[%s4 + $0x38] sm:$0xff] %v181
  %232 = vst [vmem:[%s4 + $0x40] sm:$0xff] %v186
  %233 = vst [vmem:[%s4 + $0x48] sm:$0xff] %v191
  %234 = vst [vmem:[%s4 + $0x50] sm:$0xff] %v196
  %235 = vst [vmem:[%s4 + $0x58] sm:$0xff] %v201
  %236 = vst [vmem:[%s4 + $0x60] sm:$0xff] %v206
  %237 = vst [vmem:[%s4 + $0x68] sm:$0xff] %v211
  %238 = vst [vmem:[%s4 + $0x70] sm:$0xff] %v216
  %239 = vst [vmem:[%s4 + $0x78] sm:$0xff] %v221
  // Predicated region
  $region18: #{poly_conv.3} parent=0 // pred_check
    _
  $region19: #{poly_conv.3} parent=0 // pred_check_branch
    %241 = sbr.rel (0) target = $region21
  $region20: #{poly_conv.3} parent=0 // pred_region
    _
  $region21: #{poly_conv.3} parent=0 // pred_fallthru
    _
  // Predicated region
  $region22: #{poly_conv.3} parent=0 // pred_check
    _
  $region23: #{poly_conv.3} parent=0 // pred_check_branch
    %243 = sbr.rel (0) target = $region25
  $region24: #{poly_conv.3} parent=0 // pred_region
    _
  $region25: #{poly_conv.3} parent=0 // pred_fallthru
    _

// kernel: poly_conv.4
$region0: #{poly_conv.4}
  #allocation0 [shape = 'u32[]', space=smem, size = 0x4, offset = 0x4, fixed_abs, tag = 'smem constant byte address 0x4 - core index']
  #allocation1 [shape = 'u32[144,128]{1,0:T(1,128)}', space=vmem, size = 0x12000, scoped, tag = 'internal scratch']
  #allocation2 [shape = 'f32[128,128]{1,0:T(8,128)}', space=vmem, size = 0x10000, scoped, tag = 'scratch operand']
  %s0 = inlined_call_operand.vmem [shape: bf16[128,128], index: 0, kind: input, shape index: {}]
  %s1 = inlined_call_operand.vmem [shape: f32[128,128], index: 1, kind: input, shape index: {}, may-alias: {1,3}]
  %s2 = inlined_call_operand.vmem [shape: f32[128,1], index: 2, kind: input, shape index: {}, may-alias: {2,4}]
  %s3 = inlined_call_operand.vmem [shape: f32[128,128], index: 3, kind: input, shape index: {}, may-alias: {1,3}]
  %s4 = inlined_call_operand.vmem [shape: f32[128,1], index: 4, kind: input, shape index: {}, may-alias: {2,4}]
  %s5 = inlined_call_operand.vmem [shape: f32[1,128], index: 5, kind: input, shape index: {}]
  %s6 = inlined_call_operand.vmem [shape: f32[128,128], index: 6, kind: input, shape index: {}]
  %s7 = inlined_call_operand.vmem [shape: f32[128,128], index: 7, kind: output, shape index: {0}]
  %s8 = inlined_call_operand.vmem [shape: f32[128,128], index: 8, kind: output, shape index: {1}]
  %9 = xla_tuple %s7, %s8
  %s10 = sld [smem:[#allocation0]]
  $region54: #{poly_conv.4} parent=0
    _
  %s12 = ssub.s32 1, %s10
  %s13 = scalar_select 0, %s12, %s10
  // Predicated region
  $region2: #{poly_conv.4} parent=0 // pred_check
    _
  $region3: #{poly_conv.4} parent=0 // pred_check_branch
    %15 = sbr.rel (0) target = $region5
  $region4: #{poly_conv.4} parent=0 // pred_region
    _
  $region5: #{poly_conv.4} parent=0 // pred_fallthru
    _
  // Predicated region
  $region6: #{poly_conv.4} parent=0 // pred_check
    _
  $region7: #{poly_conv.4} parent=0 // pred_check_branch
    %17 = sbr.rel (0) target = $region9
  $region8: #{poly_conv.4} parent=0 // pred_region
    _
  $region9: #{poly_conv.4} parent=0 // pred_fallthru
    _
  // Predicated region
  $region10: #{poly_conv.4} parent=0 // pred_check
    _
  $region11: #{poly_conv.4} parent=0 // pred_check_branch
    %19 = sbr.rel (0) target = $region13
  $region12: #{poly_conv.4} parent=0 // pred_region
    _
  $region13: #{poly_conv.4} parent=0 // pred_fallthru
    _
  // Predicated region
  $region14: #{poly_conv.4} parent=0 // pred_check
    _
  $region15: #{poly_conv.4} parent=0 // pred_check_branch
    %21 = sbr.rel (0) target = $region17
  $region16: #{poly_conv.4} parent=0 // pred_region
    _
  $region17: #{poly_conv.4} parent=0 // pred_fallthru
    _
  // Predicated region
  $region18: #{poly_conv.4} parent=0 // pred_check
    _
  $region19: #{poly_conv.4} parent=0 // pred_check_branch
    %23 = sbr.rel (0) target = $region21
  $region20: #{poly_conv.4} parent=0 // pred_region
    _
  $region21: #{poly_conv.4} parent=0 // pred_fallthru
    _
  // Predicated region
  $region22: #{poly_conv.4} parent=0 // pred_check
    _
  $region23: #{poly_conv.4} parent=0 // pred_check_branch
    %25 = sbr.rel (0) target = $region25
  $region24: #{poly_conv.4} parent=0 // pred_region
    _
  $region25: #{poly_conv.4} parent=0 // pred_fallthru
    _
  // Predicated region
  $region26: #{poly_conv.4} parent=0 // pred_check
    _
  $region27: #{poly_conv.4} parent=0 // pred_check_branch
    %27 = sbr.rel (0) target = $region29
  $region28: #{poly_conv.4} parent=0 // pred_region
    _
  $region29: #{poly_conv.4} parent=0 // pred_fallthru
    _
  %p28 = scmp.eq.s32.totalorder 0, 0
  // Predicated region
  $region30: #{poly_conv.4} parent=0 // pred_check
    %p29 = pneg %p28
  $region31: #{poly_conv.4} parent=0 // pred_check_branch
    %31 = sbr.rel (%p29) target = $region33
  $region32: #{poly_conv.4} parent=0 // pred_region
    %32 = vst [vmem:[#allocation2] sm:$0xff] 0.0
    %33 = vst [vmem:[#allocation2 + $0x8] sm:$0xff] 0.0
    %34 = vst [vmem:[#allocation2 + $0x10] sm:$0xff] 0.0
    %35 = vst [vmem:[#allocation2 + $0x18] sm:$0xff] 0.0
    %36 = vst [vmem:[#allocation2 + $0x20] sm:$0xff] 0.0
    %37 = vst [vmem:[#allocation2 + $0x28] sm:$0xff] 0.0
    %38 = vst [vmem:[#allocation2 + $0x30] sm:$0xff] 0.0
    %39 = vst [vmem:[#allocation2 + $0x38] sm:$0xff] 0.0
    %40 = vst [vmem:[#allocation2 + $0x40] sm:$0xff] 0.0
    %41 = vst [vmem:[#allocation2 + $0x48] sm:$0xff] 0.0
    %42 = vst [vmem:[#allocation2 + $0x50] sm:$0xff] 0.0
    %43 = vst [vmem:[#allocation2 + $0x58] sm:$0xff] 0.0
    %44 = vst [vmem:[#allocation2 + $0x60] sm:$0xff] 0.0
    %45 = vst [vmem:[#allocation2 + $0x68] sm:$0xff] 0.0
    %46 = vst [vmem:[#allocation2 + $0x70] sm:$0xff] 0.0
    %47 = vst [vmem:[#allocation2 + $0x78] sm:$0xff] 0.0
  $region33: #{poly_conv.4} parent=0 // pred_fallthru
    _
  %v48 = vld [vmem:[%s1] sm:$0xff]
  %v49 = vld [vmem:[%s1 + $0x8] sm:$0xff]
  %v50 = vld [vmem:[%s1 + $0x10] sm:$0xff]
  %v51 = vld [vmem:[%s1 + $0x18] sm:$0xff]
  %v52 = vld [vmem:[%s1 + $0x20] sm:$0xff]
  %v53 = vld [vmem:[%s1 + $0x28] sm:$0xff]
  %v54 = vld [vmem:[%s1 + $0x30] sm:$0xff]
  %v55 = vld [vmem:[%s1 + $0x38] sm:$0xff]
  %v56 = vld [vmem:[%s1 + $0x40] sm:$0xff]
  %v57 = vld [vmem:[%s1 + $0x48] sm:$0xff]
  %v58 = vld [vmem:[%s1 + $0x50] sm:$0xff]
  %v59 = vld [vmem:[%s1 + $0x58] sm:$0xff]
  %v60 = vld [vmem:[%s1 + $0x60] sm:$0xff]
  %v61 = vld [vmem:[%s1 + $0x68] sm:$0xff]
  %v62 = vld [vmem:[%s1 + $0x70] sm:$0xff]
  %v63 = vld [vmem:[%s1 + $0x78] sm:$0xff]
  %v64 = vld [vmem:[%s2] sm:$0xff]
  %v65 = vld [vmem:[%s2 + $0x8] sm:$0xff]
  %v66 = vld [vmem:[%s2 + $0x10] sm:$0xff]
  %v67 = vld [vmem:[%s2 + $0x18] sm:$0xff]
  %v68 = vld [vmem:[%s2 + $0x20] sm:$0xff]
  %v69 = vld [vmem:[%s2 + $0x28] sm:$0xff]
  %v70 = vld [vmem:[%s2 + $0x30] sm:$0xff]
  %v71 = vld [vmem:[%s2 + $0x38] sm:$0xff]
  %v72 = vld [vmem:[%s2 + $0x40] sm:$0xff]
  %v73 = vld [vmem:[%s2 + $0x48] sm:$0xff]
  %v74 = vld [vmem:[%s2 + $0x50] sm:$0xff]
  %v75 = vld [vmem:[%s2 + $0x58] sm:$0xff]
  %v76 = vld [vmem:[%s2 + $0x60] sm:$0xff]
  %v77 = vld [vmem:[%s2 + $0x68] sm:$0xff]
  %v78 = vld [vmem:[%s2 + $0x70] sm:$0xff]
  %v79 = vld [vmem:[%s2 + $0x78] sm:$0xff]
  %81 = vset.pattern.permute.xlu0 0
  %82 = vperm.xlu0 %81, %v64
  %v83 = vpop.permute.xlu0 %82
  %86 = vset.pattern.permute.xlu0 0
  %87 = vperm.xlu0 %86, %v65
  %v88 = vpop.permute.xlu0 %87
  %91 = vset.pattern.permute.xlu0 0
  %92 = vperm.xlu0 %91, %v66
  %v93 = vpop.permute.xlu0 %92
  %96 = vset.pattern.permute.xlu0 0
  %97 = vperm.xlu0 %96, %v67
  %v98 = vpop.permute.xlu0 %97
  %101 = vset.pattern.permute.xlu0 0
  %102 = vperm.xlu0 %101, %v68
  %v103 = vpop.permute.xlu0 %102
  %106 = vset.pattern.permute.xlu0 0
  %107 = vperm.xlu0 %106, %v69
  %v108 = vpop.permute.xlu0 %107
  %111 = vset.pattern.permute.xlu0 0
  %112 = vperm.xlu0 %111, %v70
  %v113 = vpop.permute.xlu0 %112
  %116 = vset.pattern.permute.xlu0 0
  %117 = vperm.xlu0 %116, %v71
  %v118 = vpop.permute.xlu0 %117
  %121 = vset.pattern.permute.xlu0 0
  %122 = vperm.xlu0 %121, %v72
  %v123 = vpop.permute.xlu0 %122
  %126 = vset.pattern.permute.xlu0 0
  %127 = vperm.xlu0 %126, %v73
  %v128 = vpop.permute.xlu0 %127
  %131 = vset.pattern.permute.xlu0 0
  %132 = vperm.xlu0 %131, %v74
  %v133 = vpop.permute.xlu0 %132
  %136 = vset.pattern.permute.xlu0 0
  %137 = vperm.xlu0 %136, %v75
  %v138 = vpop.permute.xlu0 %137
  %141 = vset.pattern.permute.xlu0 0
  %142 = vperm.xlu0 %141, %v76
  %v143 = vpop.permute.xlu0 %142
  %146 = vset.pattern.permute.xlu0 0
  %147 = vperm.xlu0 %146, %v77
  %v148 = vpop.permute.xlu0 %147
  %151 = vset.pattern.permute.xlu0 0
  %152 = vperm.xlu0 %151, %v78
  %v153 = vpop.permute.xlu0 %152
  %156 = vset.pattern.permute.xlu0 0
  %157 = vperm.xlu0 %156, %v79
  %v158 = vpop.permute.xlu0 %157
  %v160 = vmul.f32 %v48, %v83
  %v161 = vmul.f32 %v49, %v88
  %v162 = vmul.f32 %v50, %v93
  %v163 = vmul.f32 %v51, %v98
  %v164 = vmul.f32 %v52, %v103
  %v165 = vmul.f32 %v53, %v108
  %v166 = vmul.f32 %v54, %v113
  %v167 = vmul.f32 %v55, %v118
  %v168 = vmul.f32 %v56, %v123
  %v169 = vmul.f32 %v57, %v128
  %v170 = vmul.f32 %v58, %v133
  %v171 = vmul.f32 %v59, %v138
  %v172 = vmul.f32 %v60, %v143
  %v173 = vmul.f32 %v61, %v148
  %v174 = vmul.f32 %v62, %v153
  %v175 = vmul.f32 %v63, %v158
  %v176 = vld [vmem:[#allocation2] sm:$0xff]
  %v177 = vld [vmem:[#allocation2 + $0x8] sm:$0xff]
  %v178 = vld [vmem:[#allocation2 + $0x10] sm:$0xff]
  %v179 = vld [vmem:[#allocation2 + $0x18] sm:$0xff]
  %v180 = vld [vmem:[#allocation2 + $0x20] sm:$0xff]
  %v181 = vld [vmem:[#allocation2 + $0x28] sm:$0xff]
  %v182 = vld [vmem:[#allocation2 + $0x30] sm:$0xff]
  %v183 = vld [vmem:[#allocation2 + $0x38] sm:$0xff]
  %v184 = vld [vmem:[#allocation2 + $0x40] sm:$0xff]
  %v185 = vld [vmem:[#allocation2 + $0x48] sm:$0xff]
  %v186 = vld [vmem:[#allocation2 + $0x50] sm:$0xff]
  %v187 = vld [vmem:[#allocation2 + $0x58] sm:$0xff]
  %v188 = vld [vmem:[#allocation2 + $0x60] sm:$0xff]
  %v189 = vld [vmem:[#allocation2 + $0x68] sm:$0xff]
  %v190 = vld [vmem:[#allocation2 + $0x70] sm:$0xff]
  %v191 = vld [vmem:[#allocation2 + $0x78] sm:$0xff]
  %v192 = vld [vmem:[%s0] sm:$0xf]
  %v193 = vld [vmem:[%s0 + $0x4] sm:$0xf]
  %v194 = vld [vmem:[%s0 + $0x8] sm:$0xf]
  %v195 = vld [vmem:[%s0 + $0xc] sm:$0xf]
  %v196 = vld [vmem:[%s0 + $0x10] sm:$0xf]
  %v197 = vld [vmem:[%s0 + $0x14] sm:$0xf]
  %v198 = vld [vmem:[%s0 + $0x18] sm:$0xf]
  %v199 = vld [vmem:[%s0 + $0x1c] sm:$0xf]
  %v200 = vld [vmem:[%s0 + $0x20] sm:$0xf]
  %v201 = vld [vmem:[%s0 + $0x24] sm:$0xf]
  %v202 = vld [vmem:[%s0 + $0x28] sm:$0xf]
  %v203 = vld [vmem:[%s0 + $0x2c] sm:$0xf]
  %v204 = vld [vmem:[%s0 + $0x30] sm:$0xf]
  %v205 = vld [vmem:[%s0 + $0x34] sm:$0xf]
  %v206 = vld [vmem:[%s0 + $0x38] sm:$0xf]
  %v207 = vld [vmem:[%s0 + $0x3c] sm:$0xf]
  %v208 = vunpack.c.l.bf16 %v192
  %v209 = vunpack.c.l.bf16 %v193
  %v210 = vunpack.c.l.bf16 %v194
  %v211 = vunpack.c.l.bf16 %v195
  %v212 = vunpack.c.l.bf16 %v196
  %v213 = vunpack.c.l.bf16 %v197
  %v214 = vunpack.c.l.bf16 %v198
  %v215 = vunpack.c.l.bf16 %v199
  %v216 = vunpack.c.l.bf16 %v200
  %v217 = vunpack.c.l.bf16 %v201
  %v218 = vunpack.c.l.bf16 %v202
  %v219 = vunpack.c.l.bf16 %v203
  %v220 = vunpack.c.l.bf16 %v204
  %v221 = vunpack.c.l.bf16 %v205
  %v222 = vunpack.c.l.bf16 %v206
  %v223 = vunpack.c.l.bf16 %v207
  %224 = vmatprep.subr.mxu0 0.0
  %225 = vmatpush1.msra.mxu0 %v160
  %226 = vmatprep.subr.mxu0 0.0
  %227 = vmatpush1.msra.mxu0 %v161
  %228 = vmatprep.subr.mxu0 0.0
  %229 = vmatpush1.msra.mxu0 %v162
  %230 = vmatprep.subr.mxu0 0.0
  %231 = vmatpush1.msra.mxu0 %v163
  %232 = vmatprep.subr.mxu0 0.0
  %233 = vmatpush1.msra.mxu0 %v164
  %234 = vmatprep.subr.mxu0 0.0
  %235 = vmatpush1.msra.mxu0 %v165
  %236 = vmatprep.subr.mxu0 0.0
  %237 = vmatpush1.msra.mxu0 %v166
  %238 = vmatprep.subr.mxu0 0.0
  %239 = vmatpush1.msra.mxu0 %v167
  %240 = vmatprep.subr.mxu0 0.0
  %241 = vmatpush1.msra.mxu0 %v168
  %242 = vmatprep.subr.mxu0 0.0
  %243 = vmatpush1.msra.mxu0 %v169
  %244 = vmatprep.subr.mxu0 0.0
  %245 = vmatpush1.msra.mxu0 %v170
  %246 = vmatprep.subr.mxu0 0.0
  %247 = vmatpush1.msra.mxu0 %v171
  %248 = vmatprep.subr.mxu0 0.0
  %249 = vmatpush1.msra.mxu0 %v172
  %250 = vmatprep.subr.mxu0 0.0
  %251 = vmatpush1.msra.mxu0 %v173
  %252 = vmatprep.subr.mxu0 0.0
  %253 = vmatpush1.msra.mxu0 %v174
  %254 = vmatprep.subr.mxu0 0.0
  %255 = vmatpush1.msra.mxu0 %v175
  %256 = vmatprep.subr.mxu0 0.0
  %257 = vmatpush1.msra.mxu0 0.0
  %258 = vmatprep.subr.mxu0 0.0
  %259 = vmatpush1.msra.mxu0 0.0
  %260 = vmatprep.subr.mxu0 0.0
  %261 = vmatpush1.msra.mxu0 0.0
  %262 = vmatprep.subr.mxu0 0.0
  %263 = vmatpush1.msra.mxu0 0.0
  %264 = vmatprep.subr.mxu0 0.0
  %265 = vmatpush1.msra.mxu0 0.0
  %266 = vmatprep.subr.mxu0 0.0
  %267 = vmatpush1.msra.mxu0 0.0
  %268 = vmatprep.subr.mxu0 0.0
  %269 = vmatpush1.msra.mxu0 0.0
  %270 = vmatprep.subr.mxu0 0.0
  %271 = vmatpush1.msra.mxu0 0.0
  %272 = vmatprep.subr.mxu0 0.0
  %273 = vmatpush1.msra.mxu0 0.0
  %274 = vmatprep.subr.mxu0 0.0
  %275 = vmatpush1.msra.mxu0 0.0
  %276 = vmatprep.subr.mxu0 0.0
  %277 = vmatpush1.msra.mxu0 0.0
  %278 = vmatprep.subr.mxu0 0.0
  %279 = vmatpush1.msra.mxu0 0.0
  %280 = vmatprep.subr.mxu0 0.0
  %281 = vmatpush1.msra.mxu0 0.0
  %282 = vmatprep.subr.mxu0 0.0
  %283 = vmatpush1.msra.mxu0 0.0
  %284 = vmatprep.subr.mxu0 0.0
  %285 = vmatpush1.msra.mxu0 0.0
  %286 = vmatprep.subr.mxu0 0.0
  %287 = vmatpush1.msra.mxu0 0.0
  %288 = vmatprep.mubr.f32.mxu0 0.0
  %289 = vmatmul.mubr.f32.gmra.mrb[0].mxu0 %v208
  %v290 = vpop.f32.mrb[0].mxu0
  %v291 = vadd.f32 0.0, %v290
  %v292 = vpop.f32.mrb[0].mxu0
  %293 = vmatprep.mubr.f32.mxu0 0.0
  %294 = vmatmul.mubr.f32.gmra.mrb[0].mxu0 %v209
  %v295 = vpop.f32.mrb[0].mxu0
  %v296 = vadd.f32 0.0, %v295
  %v297 = vpop.f32.mrb[0].mxu0
  %298 = vmatprep.mubr.f32.mxu0 0.0
  %299 = vmatmul.mubr.f32.gmra.mrb[0].mxu0 %v210
  %v300 = vpop.f32.mrb[0].mxu0
  %v301 = vadd.f32 0.0, %v300
  %v302 = vpop.f32.mrb[0].mxu0
  %303 = vmatprep.mubr.f32.mxu0 0.0
  %304 = vmatmul.mubr.f32.gmra.mrb[0].mxu0 %v211
  %v305 = vpop.f32.mrb[0].mxu0
  %v306 = vadd.f32 0.0, %v305
  %v307 = vpop.f32.mrb[0].mxu0
  %308 = vmatprep.mubr.f32.mxu0 0.0
  %309 = vmatmul.mubr.f32.gmra.mrb[0].mxu0 %v212
  %v310 = vpop.f32.mrb[0].mxu0
  %v311 = vadd.f32 0.0, %v310
  %v312 = vpop.f32.mrb[0].mxu0
  %313 = vmatprep.mubr.f32.mxu0 0.0
  %314 = vmatmul.mubr.f32.gmra.mrb[0].mxu0 %v213
  %v315 = vpop.f32.mrb[0].mxu0
  %v316 = vadd.f32 0.0, %v315
  %v317 = vpop.f32.mrb[0].mxu0
  %318 = vmatprep.mubr.f32.mxu0 0.0
  %319 = vmatmul.mubr.f32.gmra.mrb[0].mxu0 %v214
  %v320 = vpop.f32.mrb[0].mxu0
  %v321 = vadd.f32 0.0, %v320
  %v322 = vpop.f32.mrb[0].mxu0
  %323 = vmatprep.mubr.f32.mxu0 0.0
  %324 = vmatmul.mubr.f32.gmra.mrb[0].mxu0 %v215
  %v325 = vpop.f32.mrb[0].mxu0
  %v326 = vadd.f32 0.0, %v325
  %v327 = vpop.f32.mrb[0].mxu0
  %328 = vmatprep.mubr.f32.mxu0 0.0
  %329 = vmatmul.mubr.f32.gmra.mrb[0].mxu0 %v216
  %v330 = vpop.f32.mrb[0].mxu0
  %v331 = vadd.f32 0.0, %v330
  %v332 = vpop.f32.mrb[0].mxu0
  %333 = vmatprep.mubr.f32.mxu0 0.0
  %334 = vmatmul.mubr.f32.gmra.mrb[0].mxu0 %v217
  %v335 = vpop.f32.mrb[0].mxu0
  %v336 = vadd.f32 0.0, %v335
  %v337 = vpop.f32.mrb[0].mxu0
  %338 = vmatprep.mubr.f32.mxu0 0.0
  %339 = vmatmul.mubr.f32.gmra.mrb[0].mxu0 %v218
  %v340 = vpop.f32.mrb[0].mxu0
  %v341 = vadd.f32 0.0, %v340
  %v342 = vpop.f32.mrb[0].mxu0
  %343 = vmatprep.mubr.f32.mxu0 0.0
  %344 = vmatmul.mubr.f32.gmra.mrb[0].mxu0 %v219
  %v345 = vpop.f32.mrb[0].mxu0
  %v346 = vadd.f32 0.0, %v345
  %v347 = vpop.f32.mrb[0].mxu0
  %348 = vmatprep.mubr.f32.mxu0 0.0
  %349 = vmatmul.mubr.f32.gmra.mrb[0].mxu0 %v220
  %v350 = vpop.f32.mrb[0].mxu0
  %v351 = vadd.f32 0.0, %v350
  %v352 = vpop.f32.mrb[0].mxu0
  %353 = vmatprep.mubr.f32.mxu0 0.0
  %354 = vmatmul.mubr.f32.gmra.mrb[0].mxu0 %v221
  %v355 = vpop.f32.mrb[0].mxu0
  %v356 = vadd.f32 0.0, %v355
  %v357 = vpop.f32.mrb[0].mxu0
  %358 = vmatprep.mubr.f32.mxu0 0.0
  %359 = vmatmul.mubr.f32.gmra.mrb[0].mxu0 %v222
  %v360 = vpop.f32.mrb[0].mxu0
  %v361 = vadd.f32 0.0, %v360
  %v362 = vpop.f32.mrb[0].mxu0
  %363 = vmatprep.mubr.f32.mxu0 0.0
  %364 = vmatmul.mubr.f32.gmra.mrb[0].mxu0 %v223
  %v365 = vpop.f32.mrb[0].mxu0
  %v366 = vadd.f32 0.0, %v365
  %v367 = vpop.f32.mrb[0].mxu0
  %368 = vdwg.mxu0
  %v369 = vadd.f32 %v176, %v291
  %v370 = vadd.f32 %v177, %v296
  %v371 = vadd.f32 %v178, %v301
  %v372 = vadd.f32 %v179, %v306
  %v373 = vadd.f32 %v180, %v311
  %v374 = vadd.f32 %v181, %v316
  %v375 = vadd.f32 %v182, %v321
  %v376 = vadd.f32 %v183, %v326
  %v377 = vadd.f32 %v184, %v331
  %v378 = vadd.f32 %v185, %v336
  %v379 = vadd.f32 %v186, %v341
  %v380 = vadd.f32 %v187, %v346
  %v381 = vadd.f32 %v188, %v351
  %v382 = vadd.f32 %v189, %v356
  %v383 = vadd.f32 %v190, %v361
  %v384 = vadd.f32 %v191, %v366
  %385 = vst [vmem:[#allocation2] sm:$0xff] %v369
  %386 = vst [vmem:[#allocation2 + $0x8] sm:$0xff] %v370
  %387 = vst [vmem:[#allocation2 + $0x10] sm:$0xff] %v371
  %388 = vst [vmem:[#allocation2 + $0x18] sm:$0xff] %v372
  %389 = vst [vmem:[#allocation2 + $0x20] sm:$0xff] %v373
  %390 = vst [vmem:[#allocation2 + $0x28] sm:$0xff] %v374
  %391 = vst [vmem:[#allocation2 + $0x30] sm:$0xff] %v375
  %392 = vst [vmem:[#allocation2 + $0x38] sm:$0xff] %v376
  %393 = vst [vmem:[#allocation2 + $0x40] sm:$0xff] %v377
  %394 = vst [vmem:[#allocation2 + $0x48] sm:$0xff] %v378
  %395 = vst [vmem:[#allocation2 + $0x50] sm:$0xff] %v379
  %396 = vst [vmem:[#allocation2 + $0x58] sm:$0xff] %v380
  %397 = vst [vmem:[#allocation2 + $0x60] sm:$0xff] %v381
  %398 = vst [vmem:[#allocation2 + $0x68] sm:$0xff] %v382
  %399 = vst [vmem:[#allocation2 + $0x70] sm:$0xff] %v383
  %400 = vst [vmem:[#allocation2 + $0x78] sm:$0xff] %v384
  // Predicated region
  $region34: #{poly_conv.4} parent=0 // pred_check
    %p401 = pneg %p28
  $region35: #{poly_conv.4} parent=0 // pred_check_branch
    %403 = sbr.rel (%p401) target = $region37
  $region36: #{poly_conv.4} parent=0 // pred_region
    %v404 = vld [vmem:[%s3] sm:$0xff]
    %v405 = vld [vmem:[%s3 + $0x8] sm:$0xff]
    %v406 = vld [vmem:[%s3 + $0x10] sm:$0xff]
    %v407 = vld [vmem:[%s3 + $0x18] sm:$0xff]
    %v408 = vld [vmem:[%s3 + $0x20] sm:$0xff]
    %v409 = vld [vmem:[%s3 + $0x28] sm:$0xff]
    %v410 = vld [vmem:[%s3 + $0x30] sm:$0xff]
    %v411 = vld [vmem:[%s3 + $0x38] sm:$0xff]
    %v412 = vld [vmem:[%s3 + $0x40] sm:$0xff]
    %v413 = vld [vmem:[%s3 + $0x48] sm:$0xff]
    %v414 = vld [vmem:[%s3 + $0x50] sm:$0xff]
    %v415 = vld [vmem:[%s3 + $0x58] sm:$0xff]
    %v416 = vld [vmem:[%s3 + $0x60] sm:$0xff]
    %v417 = vld [vmem:[%s3 + $0x68] sm:$0xff]
    %v418 = vld [vmem:[%s3 + $0x70] sm:$0xff]
    %v419 = vld [vmem:[%s3 + $0x78] sm:$0xff]
    %v420 = vld [vmem:[#allocation2] sm:$0xff]
    %v421 = vld [vmem:[#allocation2 + $0x8] sm:$0xff]
    %v422 = vld [vmem:[#allocation2 + $0x10] sm:$0xff]
    %v423 = vld [vmem:[#allocation2 + $0x18] sm:$0xff]
    %v424 = vld [vmem:[#allocation2 + $0x20] sm:$0xff]
    %v425 = vld [vmem:[#allocation2 + $0x28] sm:$0xff]
    %v426 = vld [vmem:[#allocation2 + $0x30] sm:$0xff]
    %v427 = vld [vmem:[#allocation2 + $0x38] sm:$0xff]
    %v428 = vld [vmem:[#allocation2 + $0x40] sm:$0xff]
    %v429 = vld [vmem:[#allocation2 + $0x48] sm:$0xff]
    %v430 = vld [vmem:[#allocation2 + $0x50] sm:$0xff]
    %v431 = vld [vmem:[#allocation2 + $0x58] sm:$0xff]
    %v432 = vld [vmem:[#allocation2 + $0x60] sm:$0xff]
    %v433 = vld [vmem:[#allocation2 + $0x68] sm:$0xff]
    %v434 = vld [vmem:[#allocation2 + $0x70] sm:$0xff]
    %v435 = vld [vmem:[#allocation2 + $0x78] sm:$0xff]
    %v436 = vld [vmem:[%s4] sm:$0xff]
    %v437 = vld [vmem:[%s4 + $0x8] sm:$0xff]
    %v438 = vld [vmem:[%s4 + $0x10] sm:$0xff]
    %v439 = vld [vmem:[%s4 + $0x18] sm:$0xff]
    %v440 = vld [vmem:[%s4 + $0x20] sm:$0xff]
    %v441 = vld [vmem:[%s4 + $0x28] sm:$0xff]
    %v442 = vld [vmem:[%s4 + $0x30] sm:$0xff]
    %v443 = vld [vmem:[%s4 + $0x38] sm:$0xff]
    %v444 = vld [vmem:[%s4 + $0x40] sm:$0xff]
    %v445 = vld [vmem:[%s4 + $0x48] sm:$0xff]
    %v446 = vld [vmem:[%s4 + $0x50] sm:$0xff]
    %v447 = vld [vmem:[%s4 + $0x58] sm:$0xff]
    %v448 = vld [vmem:[%s4 + $0x60] sm:$0xff]
    %v449 = vld [vmem:[%s4 + $0x68] sm:$0xff]
    %v450 = vld [vmem:[%s4 + $0x70] sm:$0xff]
    %v451 = vld [vmem:[%s4 + $0x78] sm:$0xff]
    %453 = vset.pattern.permute.xlu0 0
    %454 = vperm.xlu0 %453, %v436
    %v455 = vpop.permute.xlu0 %454
    %458 = vset.pattern.permute.xlu0 0
    %459 = vperm.xlu0 %458, %v437
    %v460 = vpop.permute.xlu0 %459
    %463 = vset.pattern.permute.xlu0 0
    %464 = vperm.xlu0 %463, %v438
    %v465 = vpop.permute.xlu0 %464
    %468 = vset.pattern.permute.xlu0 0
    %469 = vperm.xlu0 %468, %v439
    %v470 = vpop.permute.xlu0 %469
    %473 = vset.pattern.permute.xlu0 0
    %474 = vperm.xlu0 %473, %v440
    %v475 = vpop.permute.xlu0 %474
    %478 = vset.pattern.permute.xlu0 0
    %479 = vperm.xlu0 %478, %v441
    %v480 = vpop.permute.xlu0 %479
    %483 = vset.pattern.permute.xlu0 0
    %484 = vperm.xlu0 %483, %v442
    %v485 = vpop.permute.xlu0 %484
    %488 = vset.pattern.permute.xlu0 0
    %489 = vperm.xlu0 %488, %v443
    %v490 = vpop.permute.xlu0 %489
    %493 = vset.pattern.permute.xlu0 0
    %494 = vperm.xlu0 %493, %v444
    %v495 = vpop.permute.xlu0 %494
    %498 = vset.pattern.permute.xlu0 0
    %499 = vperm.xlu0 %498, %v445
    %v500 = vpop.permute.xlu0 %499
    %503 = vset.pattern.permute.xlu0 0
    %504 = vperm.xlu0 %503, %v446
    %v505 = vpop.permute.xlu0 %504
    %508 = vset.pattern.permute.xlu0 0
    %509 = vperm.xlu0 %508, %v447
    %v510 = vpop.permute.xlu0 %509
    %513 = vset.pattern.permute.xlu0 0
    %514 = vperm.xlu0 %513, %v448
    %v515 = vpop.permute.xlu0 %514
    %518 = vset.pattern.permute.xlu0 0
    %519 = vperm.xlu0 %518, %v449
    %v520 = vpop.permute.xlu0 %519
    %523 = vset.pattern.permute.xlu0 0
    %524 = vperm.xlu0 %523, %v450
    %v525 = vpop.permute.xlu0 %524
    %528 = vset.pattern.permute.xlu0 0
    %529 = vperm.xlu0 %528, %v451
    %v530 = vpop.permute.xlu0 %529
    %v532 = vmul.f32 %v420, %v455
    %v533 = vmul.f32 %v421, %v460
    %v534 = vmul.f32 %v422, %v465
    %v535 = vmul.f32 %v423, %v470
    %v536 = vmul.f32 %v424, %v475
    %v537 = vmul.f32 %v425, %v480
    %v538 = vmul.f32 %v426, %v485
    %v539 = vmul.f32 %v427, %v490
    %v540 = vmul.f32 %v428, %v495
    %v541 = vmul.f32 %v429, %v500
    %v542 = vmul.f32 %v430, %v505
    %v543 = vmul.f32 %v431, %v510
    %v544 = vmul.f32 %v432, %v515
    %v545 = vmul.f32 %v433, %v520
    %v546 = vmul.f32 %v434, %v525
    %v547 = vmul.f32 %v435, %v530
    %v548 = vld [vmem:[%s5] sm:$0x1]
    %v550 = vlaneseq
    %v551 = vshrl.u32 %v550, 7
    %v552 = vsub.s32 0, %v551
    %v553 = vrot.slane %v548, %v552
    %v555 = vmul.f32 %v532, %v553
    %v556 = vmul.f32 %v533, %v553
    %v557 = vmul.f32 %v534, %v553
    %v558 = vmul.f32 %v535, %v553
    %v559 = vmul.f32 %v536, %v553
    %v560 = vmul.f32 %v537, %v553
    %v561 = vmul.f32 %v538, %v553
    %v562 = vmul.f32 %v539, %v553
    %v563 = vmul.f32 %v540, %v553
    %v564 = vmul.f32 %v541, %v553
    %v565 = vmul.f32 %v542, %v553
    %v566 = vmul.f32 %v543, %v553
    %v567 = vmul.f32 %v544, %v553
    %v568 = vmul.f32 %v545, %v553
    %v569 = vmul.f32 %v546, %v553
    %v570 = vmul.f32 %v547, %v553
    %v571 = vsub.f32 %v404, %v555
    %v572 = vsub.f32 %v405, %v556
    %v573 = vsub.f32 %v406, %v557
    %v574 = vsub.f32 %v407, %v558
    %v575 = vsub.f32 %v408, %v559
    %v576 = vsub.f32 %v409, %v560
    %v577 = vsub.f32 %v410, %v561
    %v578 = vsub.f32 %v411, %v562
    %v579 = vsub.f32 %v412, %v563
    %v580 = vsub.f32 %v413, %v564
    %v581 = vsub.f32 %v414, %v565
    %v582 = vsub.f32 %v415, %v566
    %v583 = vsub.f32 %v416, %v567
    %v584 = vsub.f32 %v417, %v568
    %v585 = vsub.f32 %v418, %v569
    %v586 = vsub.f32 %v419, %v570
    %587 = vst [vmem:[%s7] sm:$0xff] %v571
    %588 = vst [vmem:[%s7 + $0x8] sm:$0xff] %v572
    %589 = vst [vmem:[%s7 + $0x10] sm:$0xff] %v573
    %590 = vst [vmem:[%s7 + $0x18] sm:$0xff] %v574
    %591 = vst [vmem:[%s7 + $0x20] sm:$0xff] %v575
    %592 = vst [vmem:[%s7 + $0x28] sm:$0xff] %v576
    %593 = vst [vmem:[%s7 + $0x30] sm:$0xff] %v577
    %594 = vst [vmem:[%s7 + $0x38] sm:$0xff] %v578
    %595 = vst [vmem:[%s7 + $0x40] sm:$0xff] %v579
    %596 = vst [vmem:[%s7 + $0x48] sm:$0xff] %v580
    %597 = vst [vmem:[%s7 + $0x50] sm:$0xff] %v581
    %598 = vst [vmem:[%s7 + $0x58] sm:$0xff] %v582
    %599 = vst [vmem:[%s7 + $0x60] sm:$0xff] %v583
    %600 = vst [vmem:[%s7 + $0x68] sm:$0xff] %v584
    %601 = vst [vmem:[%s7 + $0x70] sm:$0xff] %v585
    %602 = vst [vmem:[%s7 + $0x78] sm:$0xff] %v586
    %v603 = vld [vmem:[%s6] sm:$0xff]
    %v604 = vld [vmem:[%s6 + $0x8] sm:$0xff]
    %v605 = vld [vmem:[%s6 + $0x10] sm:$0xff]
    %v606 = vld [vmem:[%s6 + $0x18] sm:$0xff]
    %v607 = vld [vmem:[%s6 + $0x20] sm:$0xff]
    %v608 = vld [vmem:[%s6 + $0x28] sm:$0xff]
    %v609 = vld [vmem:[%s6 + $0x30] sm:$0xff]
    %v610 = vld [vmem:[%s6 + $0x38] sm:$0xff]
    %v611 = vld [vmem:[%s6 + $0x40] sm:$0xff]
    %v612 = vld [vmem:[%s6 + $0x48] sm:$0xff]
    %v613 = vld [vmem:[%s6 + $0x50] sm:$0xff]
    %v614 = vld [vmem:[%s6 + $0x58] sm:$0xff]
    %v615 = vld [vmem:[%s6 + $0x60] sm:$0xff]
    %v616 = vld [vmem:[%s6 + $0x68] sm:$0xff]
    %v617 = vld [vmem:[%s6 + $0x70] sm:$0xff]
    %v618 = vld [vmem:[%s6 + $0x78] sm:$0xff]
    %v619 = vmul.f32 %v571, 0.5
    %v620 = vmul.f32 %v572, 0.5
    %v621 = vmul.f32 %v573, 0.5
    %v622 = vmul.f32 %v574, 0.5
    %v623 = vmul.f32 %v575, 0.5
    %v624 = vmul.f32 %v576, 0.5
    %v625 = vmul.f32 %v577, 0.5
    %v626 = vmul.f32 %v578, 0.5
    %v627 = vmul.f32 %v579, 0.5
    %v628 = vmul.f32 %v580, 0.5
    %v629 = vmul.f32 %v581, 0.5
    %v630 = vmul.f32 %v582, 0.5
    %v631 = vmul.f32 %v583, 0.5
    %v632 = vmul.f32 %v584, 0.5
    %v633 = vmul.f32 %v585, 0.5
    %v634 = vmul.f32 %v586, 0.5
    %v635 = vadd.f32 %v603, %v619
    %v636 = vadd.f32 %v604, %v620
    %v637 = vadd.f32 %v605, %v621
    %v638 = vadd.f32 %v606, %v622
    %v639 = vadd.f32 %v607, %v623
    %v640 = vadd.f32 %v608, %v624
    %v641 = vadd.f32 %v609, %v625
    %v642 = vadd.f32 %v610, %v626
    %v643 = vadd.f32 %v611, %v627
    %v644 = vadd.f32 %v612, %v628
    %v645 = vadd.f32 %v613, %v629
    %v646 = vadd.f32 %v614, %v630
    %v647 = vadd.f32 %v615, %v631
    %v648 = vadd.f32 %v616, %v632
    %v649 = vadd.f32 %v617, %v633
    %v650 = vadd.f32 %v618, %v634
    %651 = vst [vmem:[%s8] sm:$0xff] %v635
    %652 = vst [vmem:[%s8 + $0x8] sm:$0xff] %v636
    %653 = vst [vmem:[%s8 + $0x10] sm:$0xff] %v637
    %654 = vst [vmem:[%s8 + $0x18] sm:$0xff] %v638
    %655 = vst [vmem:[%s8 + $0x20] sm:$0xff] %v639
    %656 = vst [vmem:[%s8 + $0x28] sm:$0xff] %v640
    %657 = vst [vmem:[%s8 + $0x30] sm:$0xff] %v641
    %658 = vst [vmem:[%s8 + $0x38] sm:$0xff] %v642
    %659 = vst [vmem:[%s8 + $0x40] sm:$0xff] %v643
    %660 = vst [vmem:[%s8 + $0x48] sm:$0xff] %v644
    %661 = vst [vmem:[%s8 + $0x50] sm:$0xff] %v645
    %662 = vst [vmem:[%s8 + $0x58] sm:$0xff] %v646
    %663 = vst [vmem:[%s8 + $0x60] sm:$0xff] %v647
    %664 = vst [vmem:[%s8 + $0x68] sm:$0xff] %v648
    %665 = vst [vmem:[%s8 + $0x70] sm:$0xff] %v649
    %666 = vst [vmem:[%s8 + $0x78] sm:$0xff] %v650
  $region37: #{poly_conv.4} parent=0 // pred_fallthru
    _
  // Predicated region
  $region38: #{poly_conv.4} parent=0 // pred_check
    _
  $region39: #{poly_conv.4} parent=0 // pred_check_branch
    %668 = sbr.rel (0) target = $region41
  $region40: #{poly_conv.4} parent=0 // pred_region
    _
  $region41: #{poly_conv.4} parent=0 // pred_fallthru
    _
  // Predicated region
  $region42: #{poly_conv.4} parent=0 // pred_check
    _
  $region43: #{poly_conv.4} parent=0 // pred_check_branch
    %670 = sbr.rel (0) target = $region45
  $region44: #{poly_conv.4} parent=0 // pred_region
    _
  $region45: #{poly_conv.4} parent=0 // pred_fallthru
    _
  // Predicated region
  $region46: #{poly_conv.4} parent=0 // pred_check
    _
  $region47: #{poly_conv.4} parent=0 // pred_check_branch
    %672 = sbr.rel (0) target = $region49
  $region48: #{poly_conv.4} parent=0 // pred_region
    _
  $region49: #{poly_conv.4} parent=0 // pred_fallthru
    _
  // Predicated region
  $region50: #{poly_conv.4} parent=0 // pred_check
    _
  $region51: #{poly_conv.4} parent=0 // pred_check_branch
    %674 = sbr.rel (0) target = $region53
  $region52: #{poly_conv.4} parent=0 // pred_region
    _
  $region53: #{poly_conv.4} parent=0 // pred_fallthru
    _

// kernel: poly_conv.5
$region0: #{poly_conv.5}
  #allocation0 [shape = 'u32[]', space=smem, size = 0x4, offset = 0x4, fixed_abs, tag = 'smem constant byte address 0x4 - core index']
  #allocation1 [shape = 'u32[144,128]{1,0:T(1,128)}', space=vmem, size = 0x12000, scoped, tag = 'internal scratch']
  #allocation2 [shape = 'f32[128,128]{1,0:T(8,128)}', space=vmem, size = 0x10000, scoped, tag = 'scratch operand']
  %s0 = inlined_call_operand.vmem [shape: bf16[128,128], index: 0, kind: input, shape index: {}]
  %s1 = inlined_call_operand.vmem [shape: f32[128,128], index: 1, kind: input, shape index: {}, may-alias: {1,3}]
  %s2 = inlined_call_operand.vmem [shape: f32[128,1], index: 2, kind: input, shape index: {}, may-alias: {2,4}]
  %s3 = inlined_call_operand.vmem [shape: f32[128,128], index: 3, kind: input, shape index: {}, may-alias: {1,3}]
  %s4 = inlined_call_operand.vmem [shape: f32[128,1], index: 4, kind: input, shape index: {}, may-alias: {2,4}]
  %s5 = inlined_call_operand.vmem [shape: f32[1,128], index: 5, kind: input, shape index: {}]
  %s6 = inlined_call_operand.vmem [shape: f32[128,128], index: 6, kind: input, shape index: {}]
  %s7 = inlined_call_operand.hbm [shape: f32[128,128], index: 7, kind: output, shape index: {0}]
  %s8 = inlined_call_operand.vmem [shape: f32[128,128], index: 8, kind: output, shape index: {1}]
  %9 = xla_tuple %s7, %s8
  %s10 = sld [smem:[#allocation0]]
  $region54: #{poly_conv.5} parent=0
    _
  %s12 = ssub.s32 1, %s10
  %s13 = scalar_select 0, %s12, %s10
  $region1: #{poly_conv.5} parent=0
    #allocation3 [shape = 'u8[65536]{0}', space=vmem, size = 0x10000, scoped, tag = 'output window, operand 0, single buffered']
    #allocation4 [shape = 's32[1]{0}', space=sflag, size = 0x4, scoped, tag = 'scoped memory for poly_conv.5']
    %14 = vsyncpa [#allocation4], 0
    // Predicated region
    $region2: #{poly_conv.5} parent=1 // pred_check
      _
    $region3: #{poly_conv.5} parent=1 // pred_check_branch
      %16 = sbr.rel (0) target = $region5
    $region4: #{poly_conv.5} parent=1 // pred_region
      _
    $region5: #{poly_conv.5} parent=1 // pred_fallthru
      _
    // Predicated region
    $region6: #{poly_conv.5} parent=1 // pred_check
      _
    $region7: #{poly_conv.5} parent=1 // pred_check_branch
      %18 = sbr.rel (0) target = $region9
    $region8: #{poly_conv.5} parent=1 // pred_region
      _
    $region9: #{poly_conv.5} parent=1 // pred_fallthru
      _
    // Predicated region
    $region10: #{poly_conv.5} parent=1 // pred_check
      _
    $region11: #{poly_conv.5} parent=1 // pred_check_branch
      %20 = sbr.rel (0) target = $region13
    $region12: #{poly_conv.5} parent=1 // pred_region
      _
    $region13: #{poly_conv.5} parent=1 // pred_fallthru
      _
    // Predicated region
    $region14: #{poly_conv.5} parent=1 // pred_check
      _
    $region15: #{poly_conv.5} parent=1 // pred_check_branch
      %22 = sbr.rel (0) target = $region17
    $region16: #{poly_conv.5} parent=1 // pred_region
      _
    $region17: #{poly_conv.5} parent=1 // pred_fallthru
      _
    // Predicated region
    $region18: #{poly_conv.5} parent=1 // pred_check
      _
    $region19: #{poly_conv.5} parent=1 // pred_check_branch
      %24 = sbr.rel (0) target = $region21
    $region20: #{poly_conv.5} parent=1 // pred_region
      _
    $region21: #{poly_conv.5} parent=1 // pred_fallthru
      _
    // Predicated region
    $region22: #{poly_conv.5} parent=1 // pred_check
      _
    $region23: #{poly_conv.5} parent=1 // pred_check_branch
      %26 = sbr.rel (0) target = $region25
    $region24: #{poly_conv.5} parent=1 // pred_region
      _
    $region25: #{poly_conv.5} parent=1 // pred_fallthru
      _
    // Predicated region
    $region26: #{poly_conv.5} parent=1 // pred_check
      _
    $region27: #{poly_conv.5} parent=1 // pred_check_branch
      %28 = sbr.rel (0) target = $region29
    $region28: #{poly_conv.5} parent=1 // pred_region
      _
    $region29: #{poly_conv.5} parent=1 // pred_fallthru
      _
    %p29 = scmp.eq.s32.totalorder 0, 0
    // Predicated region
    $region30: #{poly_conv.5} parent=1 // pred_check
      %p30 = pneg %p29
    $region31: #{poly_conv.5} parent=1 // pred_check_branch
      %32 = sbr.rel (%p30) target = $region33
    $region32: #{poly_conv.5} parent=1 // pred_region
      %33 = vst [vmem:[#allocation2] sm:$0xff] 0.0
      %34 = vst [vmem:[#allocation2 + $0x8] sm:$0xff] 0.0
      %35 = vst [vmem:[#allocation2 + $0x10] sm:$0xff] 0.0
      %36 = vst [vmem:[#allocation2 + $0x18] sm:$0xff] 0.0
      %37 = vst [vmem:[#allocation2 + $0x20] sm:$0xff] 0.0
      %38 = vst [vmem:[#allocation2 + $0x28] sm:$0xff] 0.0
      %39 = vst [vmem:[#allocation2 + $0x30] sm:$0xff] 0.0
      %40 = vst [vmem:[#allocation2 + $0x38] sm:$0xff] 0.0
      %41 = vst [vmem:[#allocation2 + $0x40] sm:$0xff] 0.0
      %42 = vst [vmem:[#allocation2 + $0x48] sm:$0xff] 0.0
      %43 = vst [vmem:[#allocation2 + $0x50] sm:$0xff] 0.0
      %44 = vst [vmem:[#allocation2 + $0x58] sm:$0xff] 0.0
      %45 = vst [vmem:[#allocation2 + $0x60] sm:$0xff] 0.0
      %46 = vst [vmem:[#allocation2 + $0x68] sm:$0xff] 0.0
      %47 = vst [vmem:[#allocation2 + $0x70] sm:$0xff] 0.0
      %48 = vst [vmem:[#allocation2 + $0x78] sm:$0xff] 0.0
    $region33: #{poly_conv.5} parent=1 // pred_fallthru
      _
    %v49 = vld [vmem:[%s1] sm:$0xff]
    %v50 = vld [vmem:[%s1 + $0x8] sm:$0xff]
    %v51 = vld [vmem:[%s1 + $0x10] sm:$0xff]
    %v52 = vld [vmem:[%s1 + $0x18] sm:$0xff]
    %v53 = vld [vmem:[%s1 + $0x20] sm:$0xff]
    %v54 = vld [vmem:[%s1 + $0x28] sm:$0xff]
    %v55 = vld [vmem:[%s1 + $0x30] sm:$0xff]
    %v56 = vld [vmem:[%s1 + $0x38] sm:$0xff]
    %v57 = vld [vmem:[%s1 + $0x40] sm:$0xff]
    %v58 = vld [vmem:[%s1 + $0x48] sm:$0xff]
    %v59 = vld [vmem:[%s1 + $0x50] sm:$0xff]
    %v60 = vld [vmem:[%s1 + $0x58] sm:$0xff]
    %v61 = vld [vmem:[%s1 + $0x60] sm:$0xff]
    %v62 = vld [vmem:[%s1 + $0x68] sm:$0xff]
    %v63 = vld [vmem:[%s1 + $0x70] sm:$0xff]
    %v64 = vld [vmem:[%s1 + $0x78] sm:$0xff]
    %v65 = vld [vmem:[%s2] sm:$0xff]
    %v66 = vld [vmem:[%s2 + $0x8] sm:$0xff]
    %v67 = vld [vmem:[%s2 + $0x10] sm:$0xff]
    %v68 = vld [vmem:[%s2 + $0x18] sm:$0xff]
    %v69 = vld [vmem:[%s2 + $0x20] sm:$0xff]
    %v70 = vld [vmem:[%s2 + $0x28] sm:$0xff]
    %v71 = vld [vmem:[%s2 + $0x30] sm:$0xff]
    %v72 = vld [vmem:[%s2 + $0x38] sm:$0xff]
    %v73 = vld [vmem:[%s2 + $0x40] sm:$0xff]
    %v74 = vld [vmem:[%s2 + $0x48] sm:$0xff]
    %v75 = vld [vmem:[%s2 + $0x50] sm:$0xff]
    %v76 = vld [vmem:[%s2 + $0x58] sm:$0xff]
    %v77 = vld [vmem:[%s2 + $0x60] sm:$0xff]
    %v78 = vld [vmem:[%s2 + $0x68] sm:$0xff]
    %v79 = vld [vmem:[%s2 + $0x70] sm:$0xff]
    %v80 = vld [vmem:[%s2 + $0x78] sm:$0xff]
    %82 = vset.pattern.permute.xlu0 0
    %83 = vperm.xlu0 %82, %v65
    %v84 = vpop.permute.xlu0 %83
    %87 = vset.pattern.permute.xlu0 0
    %88 = vperm.xlu0 %87, %v66
    %v89 = vpop.permute.xlu0 %88
    %92 = vset.pattern.permute.xlu0 0
    %93 = vperm.xlu0 %92, %v67
    %v94 = vpop.permute.xlu0 %93
    %97 = vset.pattern.permute.xlu0 0
    %98 = vperm.xlu0 %97, %v68
    %v99 = vpop.permute.xlu0 %98
    %102 = vset.pattern.permute.xlu0 0
    %103 = vperm.xlu0 %102, %v69
    %v104 = vpop.permute.xlu0 %103
    %107 = vset.pattern.permute.xlu0 0
    %108 = vperm.xlu0 %107, %v70
    %v109 = vpop.permute.xlu0 %108
    %112 = vset.pattern.permute.xlu0 0
    %113 = vperm.xlu0 %112, %v71
    %v114 = vpop.permute.xlu0 %113
    %117 = vset.pattern.permute.xlu0 0
    %118 = vperm.xlu0 %117, %v72
    %v119 = vpop.permute.xlu0 %118
    %122 = vset.pattern.permute.xlu0 0
    %123 = vperm.xlu0 %122, %v73
    %v124 = vpop.permute.xlu0 %123
    %127 = vset.pattern.permute.xlu0 0
    %128 = vperm.xlu0 %127, %v74
    %v129 = vpop.permute.xlu0 %128
    %132 = vset.pattern.permute.xlu0 0
    %133 = vperm.xlu0 %132, %v75
    %v134 = vpop.permute.xlu0 %133
    %137 = vset.pattern.permute.xlu0 0
    %138 = vperm.xlu0 %137, %v76
    %v139 = vpop.permute.xlu0 %138
    %142 = vset.pattern.permute.xlu0 0
    %143 = vperm.xlu0 %142, %v77
    %v144 = vpop.permute.xlu0 %143
    %147 = vset.pattern.permute.xlu0 0
    %148 = vperm.xlu0 %147, %v78
    %v149 = vpop.permute.xlu0 %148
    %152 = vset.pattern.permute.xlu0 0
    %153 = vperm.xlu0 %152, %v79
    %v154 = vpop.permute.xlu0 %153
    %157 = vset.pattern.permute.xlu0 0
    %158 = vperm.xlu0 %157, %v80
    %v159 = vpop.permute.xlu0 %158
    %v161 = vmul.f32 %v49, %v84
    %v162 = vmul.f32 %v50, %v89
    %v163 = vmul.f32 %v51, %v94
    %v164 = vmul.f32 %v52, %v99
    %v165 = vmul.f32 %v53, %v104
    %v166 = vmul.f32 %v54, %v109
    %v167 = vmul.f32 %v55, %v114
    %v168 = vmul.f32 %v56, %v119
    %v169 = vmul.f32 %v57, %v124
    %v170 = vmul.f32 %v58, %v129
    %v171 = vmul.f32 %v59, %v134
    %v172 = vmul.f32 %v60, %v139
    %v173 = vmul.f32 %v61, %v144
    %v174 = vmul.f32 %v62, %v149
    %v175 = vmul.f32 %v63, %v154
    %v176 = vmul.f32 %v64, %v159
    %v177 = vld [vmem:[#allocation2] sm:$0xff]
    %v178 = vld [vmem:[#allocation2 + $0x8] sm:$0xff]
    %v179 = vld [vmem:[#allocation2 + $0x10] sm:$0xff]
    %v180 = vld [vmem:[#allocation2 + $0x18] sm:$0xff]
    %v181 = vld [vmem:[#allocation2 + $0x20] sm:$0xff]
    %v182 = vld [vmem:[#allocation2 + $0x28] sm:$0xff]
    %v183 = vld [vmem:[#allocation2 + $0x30] sm:$0xff]
    %v184 = vld [vmem:[#allocation2 + $0x38] sm:$0xff]
    %v185 = vld [vmem:[#allocation2 + $0x40] sm:$0xff]
    %v186 = vld [vmem:[#allocation2 + $0x48] sm:$0xff]
    %v187 = vld [vmem:[#allocation2 + $0x50] sm:$0xff]
    %v188 = vld [vmem:[#allocation2 + $0x58] sm:$0xff]
    %v189 = vld [vmem:[#allocation2 + $0x60] sm:$0xff]
    %v190 = vld [vmem:[#allocation2 + $0x68] sm:$0xff]
    %v191 = vld [vmem:[#allocation2 + $0x70] sm:$0xff]
    %v192 = vld [vmem:[#allocation2 + $0x78] sm:$0xff]
    %v193 = vld [vmem:[%s0] sm:$0xf]
    %v194 = vld [vmem:[%s0 + $0x4] sm:$0xf]
    %v195 = vld [vmem:[%s0 + $0x8] sm:$0xf]
    %v196 = vld [vmem:[%s0 + $0xc] sm:$0xf]
    %v197 = vld [vmem:[%s0 + $0x10] sm:$0xf]
    %v198 = vld [vmem:[%s0 + $0x14] sm:$0xf]
    %v199 = vld [vmem:[%s0 + $0x18] sm:$0xf]
    %v200 = vld [vmem:[%s0 + $0x1c] sm:$0xf]
    %v201 = vld [vmem:[%s0 + $0x20] sm:$0xf]
    %v202 = vld [vmem:[%s0 + $0x24] sm:$0xf]
    %v203 = vld [vmem:[%s0 + $0x28] sm:$0xf]
    %v204 = vld [vmem:[%s0 + $0x2c] sm:$0xf]
    %v205 = vld [vmem:[%s0 + $0x30] sm:$0xf]
    %v206 = vld [vmem:[%s0 + $0x34] sm:$0xf]
    %v207 = vld [vmem:[%s0 + $0x38] sm:$0xf]
    %v208 = vld [vmem:[%s0 + $0x3c] sm:$0xf]
    %v209 = vunpack.c.l.bf16 %v193
    %v210 = vunpack.c.l.bf16 %v194
    %v211 = vunpack.c.l.bf16 %v195
    %v212 = vunpack.c.l.bf16 %v196
    %v213 = vunpack.c.l.bf16 %v197
    %v214 = vunpack.c.l.bf16 %v198
    %v215 = vunpack.c.l.bf16 %v199
    %v216 = vunpack.c.l.bf16 %v200
    %v217 = vunpack.c.l.bf16 %v201
    %v218 = vunpack.c.l.bf16 %v202
    %v219 = vunpack.c.l.bf16 %v203
    %v220 = vunpack.c.l.bf16 %v204
    %v221 = vunpack.c.l.bf16 %v205
    %v222 = vunpack.c.l.bf16 %v206
    %v223 = vunpack.c.l.bf16 %v207
    %v224 = vunpack.c.l.bf16 %v208
    %225 = vmatprep.subr.mxu0 0.0
    %226 = vmatpush1.msra.mxu0 %v161
    %227 = vmatprep.subr.mxu0 0.0
    %228 = vmatpush1.msra.mxu0 %v162
    %229 = vmatprep.subr.mxu0 0.0
    %230 = vmatpush1.msra.mxu0 %v163
    %231 = vmatprep.subr.mxu0 0.0
    %232 = vmatpush1.msra.mxu0 %v164
    %233 = vmatprep.subr.mxu0 0.0
    %234 = vmatpush1.msra.mxu0 %v165
    %235 = vmatprep.subr.mxu0 0.0
    %236 = vmatpush1.msra.mxu0 %v166
    %237 = vmatprep.subr.mxu0 0.0
    %238 = vmatpush1.msra.mxu0 %v167
    %239 = vmatprep.subr.mxu0 0.0
    %240 = vmatpush1.msra.mxu0 %v168
    %241 = vmatprep.subr.mxu0 0.0
    %242 = vmatpush1.msra.mxu0 %v169
    %243 = vmatprep.subr.mxu0 0.0
    %244 = vmatpush1.msra.mxu0 %v170
    %245 = vmatprep.subr.mxu0 0.0
    %246 = vmatpush1.msra.mxu0 %v171
    %247 = vmatprep.subr.mxu0 0.0
    %248 = vmatpush1.msra.mxu0 %v172
    %249 = vmatprep.subr.mxu0 0.0
    %250 = vmatpush1.msra.mxu0 %v173
    %251 = vmatprep.subr.mxu0 0.0
    %252 = vmatpush1.msra.mxu0 %v174
    %253 = vmatprep.subr.mxu0 0.0
    %254 = vmatpush1.msra.mxu0 %v175
    %255 = vmatprep.subr.mxu0 0.0
    %256 = vmatpush1.msra.mxu0 %v176
    %257 = vmatprep.subr.mxu0 0.0
    %258 = vmatpush1.msra.mxu0 0.0
    %259 = vmatprep.subr.mxu0 0.0
    %260 = vmatpush1.msra.mxu0 0.0
    %261 = vmatprep.subr.mxu0 0.0
    %262 = vmatpush1.msra.mxu0 0.0
    %263 = vmatprep.subr.mxu0 0.0
    %264 = vmatpush1.msra.mxu0 0.0
    %265 = vmatprep.subr.mxu0 0.0
    %266 = vmatpush1.msra.mxu0 0.0
    %267 = vmatprep.subr.mxu0 0.0
    %268 = vmatpush1.msra.mxu0 0.0
    %269 = vmatprep.subr.mxu0 0.0
    %270 = vmatpush1.msra.mxu0 0.0
    %271 = vmatprep.subr.mxu0 0.0
    %272 = vmatpush1.msra.mxu0 0.0
    %273 = vmatprep.subr.mxu0 0.0
    %274 = vmatpush1.msra.mxu0 0.0
    %275 = vmatprep.subr.mxu0 0.0
    %276 = vmatpush1.msra.mxu0 0.0
    %277 = vmatprep.subr.mxu0 0.0
    %278 = vmatpush1.msra.mxu0 0.0
    %279 = vmatprep.subr.mxu0 0.0
    %280 = vmatpush1.msra.mxu0 0.0
    %281 = vmatprep.subr.mxu0 0.0
    %282 = vmatpush1.msra.mxu0 0.0
    %283 = vmatprep.subr.mxu0 0.0
    %284 = vmatpush1.msra.mxu0 0.0
    %285 = vmatprep.subr.mxu0 0.0
    %286 = vmatpush1.msra.mxu0 0.0
    %287 = vmatprep.subr.mxu0 0.0
    %288 = vmatpush1.msra.mxu0 0.0
    %289 = vmatprep.mubr.f32.mxu0 0.0
    %290 = vmatmul.mubr.f32.gmra.mrb[0].mxu0 %v209
    %v291 = vpop.f32.mrb[0].mxu0
    %v292 = vadd.f32 0.0, %v291
    %v293 = vpop.f32.mrb[0].mxu0
    %294 = vmatprep.mubr.f32.mxu0 0.0
    %295 = vmatmul.mubr.f32.gmra.mrb[0].mxu0 %v210
    %v296 = vpop.f32.mrb[0].mxu0
    %v297 = vadd.f32 0.0, %v296
    %v298 = vpop.f32.mrb[0].mxu0
    %299 = vmatprep.mubr.f32.mxu0 0.0
    %300 = vmatmul.mubr.f32.gmra.mrb[0].mxu0 %v211
    %v301 = vpop.f32.mrb[0].mxu0
    %v302 = vadd.f32 0.0, %v301
    %v303 = vpop.f32.mrb[0].mxu0
    %304 = vmatprep.mubr.f32.mxu0 0.0
    %305 = vmatmul.mubr.f32.gmra.mrb[0].mxu0 %v212
    %v306 = vpop.f32.mrb[0].mxu0
    %v307 = vadd.f32 0.0, %v306
    %v308 = vpop.f32.mrb[0].mxu0
    %309 = vmatprep.mubr.f32.mxu0 0.0
    %310 = vmatmul.mubr.f32.gmra.mrb[0].mxu0 %v213
    %v311 = vpop.f32.mrb[0].mxu0
    %v312 = vadd.f32 0.0, %v311
    %v313 = vpop.f32.mrb[0].mxu0
    %314 = vmatprep.mubr.f32.mxu0 0.0
    %315 = vmatmul.mubr.f32.gmra.mrb[0].mxu0 %v214
    %v316 = vpop.f32.mrb[0].mxu0
    %v317 = vadd.f32 0.0, %v316
    %v318 = vpop.f32.mrb[0].mxu0
    %319 = vmatprep.mubr.f32.mxu0 0.0
    %320 = vmatmul.mubr.f32.gmra.mrb[0].mxu0 %v215
    %v321 = vpop.f32.mrb[0].mxu0
    %v322 = vadd.f32 0.0, %v321
    %v323 = vpop.f32.mrb[0].mxu0
    %324 = vmatprep.mubr.f32.mxu0 0.0
    %325 = vmatmul.mubr.f32.gmra.mrb[0].mxu0 %v216
    %v326 = vpop.f32.mrb[0].mxu0
    %v327 = vadd.f32 0.0, %v326
    %v328 = vpop.f32.mrb[0].mxu0
    %329 = vmatprep.mubr.f32.mxu0 0.0
    %330 = vmatmul.mubr.f32.gmra.mrb[0].mxu0 %v217
    %v331 = vpop.f32.mrb[0].mxu0
    %v332 = vadd.f32 0.0, %v331
    %v333 = vpop.f32.mrb[0].mxu0
    %334 = vmatprep.mubr.f32.mxu0 0.0
    %335 = vmatmul.mubr.f32.gmra.mrb[0].mxu0 %v218
    %v336 = vpop.f32.mrb[0].mxu0
    %v337 = vadd.f32 0.0, %v336
    %v338 = vpop.f32.mrb[0].mxu0
    %339 = vmatprep.mubr.f32.mxu0 0.0
    %340 = vmatmul.mubr.f32.gmra.mrb[0].mxu0 %v219
    %v341 = vpop.f32.mrb[0].mxu0
    %v342 = vadd.f32 0.0, %v341
    %v343 = vpop.f32.mrb[0].mxu0
    %344 = vmatprep.mubr.f32.mxu0 0.0
    %345 = vmatmul.mubr.f32.gmra.mrb[0].mxu0 %v220
    %v346 = vpop.f32.mrb[0].mxu0
    %v347 = vadd.f32 0.0, %v346
    %v348 = vpop.f32.mrb[0].mxu0
    %349 = vmatprep.mubr.f32.mxu0 0.0
    %350 = vmatmul.mubr.f32.gmra.mrb[0].mxu0 %v221
    %v351 = vpop.f32.mrb[0].mxu0
    %v352 = vadd.f32 0.0, %v351
    %v353 = vpop.f32.mrb[0].mxu0
    %354 = vmatprep.mubr.f32.mxu0 0.0
    %355 = vmatmul.mubr.f32.gmra.mrb[0].mxu0 %v222
    %v356 = vpop.f32.mrb[0].mxu0
    %v357 = vadd.f32 0.0, %v356
    %v358 = vpop.f32.mrb[0].mxu0
    %359 = vmatprep.mubr.f32.mxu0 0.0
    %360 = vmatmul.mubr.f32.gmra.mrb[0].mxu0 %v223
    %v361 = vpop.f32.mrb[0].mxu0
    %v362 = vadd.f32 0.0, %v361
    %v363 = vpop.f32.mrb[0].mxu0
    %364 = vmatprep.mubr.f32.mxu0 0.0
    %365 = vmatmul.mubr.f32.gmra.mrb[0].mxu0 %v224
    %v366 = vpop.f32.mrb[0].mxu0
    %v367 = vadd.f32 0.0, %v366
    %v368 = vpop.f32.mrb[0].mxu0
    %369 = vdwg.mxu0
    %v370 = vadd.f32 %v177, %v292
    %v371 = vadd.f32 %v178, %v297
    %v372 = vadd.f32 %v179, %v302
    %v373 = vadd.f32 %v180, %v307
    %v374 = vadd.f32 %v181, %v312
    %v375 = vadd.f32 %v182, %v317
    %v376 = vadd.f32 %v183, %v322
    %v377 = vadd.f32 %v184, %v327
    %v378 = vadd.f32 %v185, %v332
    %v379 = vadd.f32 %v186, %v337
    %v380 = vadd.f32 %v187, %v342
    %v381 = vadd.f32 %v188, %v347
    %v382 = vadd.f32 %v189, %v352
    %v383 = vadd.f32 %v190, %v357
    %v384 = vadd.f32 %v191, %v362
    %v385 = vadd.f32 %v192, %v367
    %386 = vst [vmem:[#allocation2] sm:$0xff] %v370
    %387 = vst [vmem:[#allocation2 + $0x8] sm:$0xff] %v371
    %388 = vst [vmem:[#allocation2 + $0x10] sm:$0xff] %v372
    %389 = vst [vmem:[#allocation2 + $0x18] sm:$0xff] %v373
    %390 = vst [vmem:[#allocation2 + $0x20] sm:$0xff] %v374
    %391 = vst [vmem:[#allocation2 + $0x28] sm:$0xff] %v375
    %392 = vst [vmem:[#allocation2 + $0x30] sm:$0xff] %v376
    %393 = vst [vmem:[#allocation2 + $0x38] sm:$0xff] %v377
    %394 = vst [vmem:[#allocation2 + $0x40] sm:$0xff] %v378
    %395 = vst [vmem:[#allocation2 + $0x48] sm:$0xff] %v379
    %396 = vst [vmem:[#allocation2 + $0x50] sm:$0xff] %v380
    %397 = vst [vmem:[#allocation2 + $0x58] sm:$0xff] %v381
    %398 = vst [vmem:[#allocation2 + $0x60] sm:$0xff] %v382
    %399 = vst [vmem:[#allocation2 + $0x68] sm:$0xff] %v383
    %400 = vst [vmem:[#allocation2 + $0x70] sm:$0xff] %v384
    %401 = vst [vmem:[#allocation2 + $0x78] sm:$0xff] %v385
    // Predicated region
    $region34: #{poly_conv.5} parent=1 // pred_check
      %p402 = pneg %p29
    $region35: #{poly_conv.5} parent=1 // pred_check_branch
      %404 = sbr.rel (%p402) target = $region37
    $region36: #{poly_conv.5} parent=1 // pred_region
      %v405 = vld [vmem:[%s3] sm:$0xff]
      %v406 = vld [vmem:[%s3 + $0x8] sm:$0xff]
      %v407 = vld [vmem:[%s3 + $0x10] sm:$0xff]
      %v408 = vld [vmem:[%s3 + $0x18] sm:$0xff]
      %v409 = vld [vmem:[%s3 + $0x20] sm:$0xff]
      %v410 = vld [vmem:[%s3 + $0x28] sm:$0xff]
      %v411 = vld [vmem:[%s3 + $0x30] sm:$0xff]
      %v412 = vld [vmem:[%s3 + $0x38] sm:$0xff]
      %v413 = vld [vmem:[%s3 + $0x40] sm:$0xff]
      %v414 = vld [vmem:[%s3 + $0x48] sm:$0xff]
      %v415 = vld [vmem:[%s3 + $0x50] sm:$0xff]
      %v416 = vld [vmem:[%s3 + $0x58] sm:$0xff]
      %v417 = vld [vmem:[%s3 + $0x60] sm:$0xff]
      %v418 = vld [vmem:[%s3 + $0x68] sm:$0xff]
      %v419 = vld [vmem:[%s3 + $0x70] sm:$0xff]
      %v420 = vld [vmem:[%s3 + $0x78] sm:$0xff]
      %v421 = vld [vmem:[#allocation2] sm:$0xff]
      %v422 = vld [vmem:[#allocation2 + $0x8] sm:$0xff]
      %v423 = vld [vmem:[#allocation2 + $0x10] sm:$0xff]
      %v424 = vld [vmem:[#allocation2 + $0x18] sm:$0xff]
      %v425 = vld [vmem:[#allocation2 + $0x20] sm:$0xff]
      %v426 = vld [vmem:[#allocation2 + $0x28] sm:$0xff]
      %v427 = vld [vmem:[#allocation2 + $0x30] sm:$0xff]
      %v428 = vld [vmem:[#allocation2 + $0x38] sm:$0xff]
      %v429 = vld [vmem:[#allocation2 + $0x40] sm:$0xff]
      %v430 = vld [vmem:[#allocation2 + $0x48] sm:$0xff]
      %v431 = vld [vmem:[#allocation2 + $0x50] sm:$0xff]
      %v432 = vld [vmem:[#allocation2 + $0x58] sm:$0xff]
      %v433 = vld [vmem:[#allocation2 + $0x60] sm:$0xff]
      %v434 = vld [vmem:[#allocation2 + $0x68] sm:$0xff]
      %v435 = vld [vmem:[#allocation2 + $0x70] sm:$0xff]
      %v436 = vld [vmem:[#allocation2 + $0x78] sm:$0xff]
      %v437 = vld [vmem:[%s4] sm:$0xff]
      %v438 = vld [vmem:[%s4 + $0x8] sm:$0xff]
      %v439 = vld [vmem:[%s4 + $0x10] sm:$0xff]
      %v440 = vld [vmem:[%s4 + $0x18] sm:$0xff]
      %v441 = vld [vmem:[%s4 + $0x20] sm:$0xff]
      %v442 = vld [vmem:[%s4 + $0x28] sm:$0xff]
      %v443 = vld [vmem:[%s4 + $0x30] sm:$0xff]
      %v444 = vld [vmem:[%s4 + $0x38] sm:$0xff]
      %v445 = vld [vmem:[%s4 + $0x40] sm:$0xff]
      %v446 = vld [vmem:[%s4 + $0x48] sm:$0xff]
      %v447 = vld [vmem:[%s4 + $0x50] sm:$0xff]
      %v448 = vld [vmem:[%s4 + $0x58] sm:$0xff]
      %v449 = vld [vmem:[%s4 + $0x60] sm:$0xff]
      %v450 = vld [vmem:[%s4 + $0x68] sm:$0xff]
      %v451 = vld [vmem:[%s4 + $0x70] sm:$0xff]
      %v452 = vld [vmem:[%s4 + $0x78] sm:$0xff]
      %454 = vset.pattern.permute.xlu0 0
      %455 = vperm.xlu0 %454, %v437
      %v456 = vpop.permute.xlu0 %455
      %459 = vset.pattern.permute.xlu0 0
      %460 = vperm.xlu0 %459, %v438
      %v461 = vpop.permute.xlu0 %460
      %464 = vset.pattern.permute.xlu0 0
      %465 = vperm.xlu0 %464, %v439
      %v466 = vpop.permute.xlu0 %465
      %469 = vset.pattern.permute.xlu0 0
      %470 = vperm.xlu0 %469, %v440
      %v471 = vpop.permute.xlu0 %470
      %474 = vset.pattern.permute.xlu0 0
      %475 = vperm.xlu0 %474, %v441
      %v476 = vpop.permute.xlu0 %475
      %479 = vset.pattern.permute.xlu0 0
      %480 = vperm.xlu0 %479, %v442
      %v481 = vpop.permute.xlu0 %480
      %484 = vset.pattern.permute.xlu0 0
      %485 = vperm.xlu0 %484, %v443
      %v486 = vpop.permute.xlu0 %485
      %489 = vset.pattern.permute.xlu0 0
      %490 = vperm.xlu0 %489, %v444
      %v491 = vpop.permute.xlu0 %490
      %494 = vset.pattern.permute.xlu0 0
      %495 = vperm.xlu0 %494, %v445
      %v496 = vpop.permute.xlu0 %495
      %499 = vset.pattern.permute.xlu0 0
      %500 = vperm.xlu0 %499, %v446
      %v501 = vpop.permute.xlu0 %500
      %504 = vset.pattern.permute.xlu0 0
      %505 = vperm.xlu0 %504, %v447
      %v506 = vpop.permute.xlu0 %505
      %509 = vset.pattern.permute.xlu0 0
      %510 = vperm.xlu0 %509, %v448
      %v511 = vpop.permute.xlu0 %510
      %514 = vset.pattern.permute.xlu0 0
      %515 = vperm.xlu0 %514, %v449
      %v516 = vpop.permute.xlu0 %515
      %519 = vset.pattern.permute.xlu0 0
      %520 = vperm.xlu0 %519, %v450
      %v521 = vpop.permute.xlu0 %520
      %524 = vset.pattern.permute.xlu0 0
      %525 = vperm.xlu0 %524, %v451
      %v526 = vpop.permute.xlu0 %525
      %529 = vset.pattern.permute.xlu0 0
      %530 = vperm.xlu0 %529, %v452
      %v531 = vpop.permute.xlu0 %530
      %v533 = vmul.f32 %v421, %v456
      %v534 = vmul.f32 %v422, %v461
      %v535 = vmul.f32 %v423, %v466
      %v536 = vmul.f32 %v424, %v471
      %v537 = vmul.f32 %v425, %v476
      %v538 = vmul.f32 %v426, %v481
      %v539 = vmul.f32 %v427, %v486
      %v540 = vmul.f32 %v428, %v491
      %v541 = vmul.f32 %v429, %v496
      %v542 = vmul.f32 %v430, %v501
      %v543 = vmul.f32 %v431, %v506
      %v544 = vmul.f32 %v432, %v511
      %v545 = vmul.f32 %v433, %v516
      %v546 = vmul.f32 %v434, %v521
      %v547 = vmul.f32 %v435, %v526
      %v548 = vmul.f32 %v436, %v531
      %v549 = vld [vmem:[%s5] sm:$0x1]
      %v551 = vlaneseq
      %v552 = vshrl.u32 %v551, 7
      %v553 = vsub.s32 0, %v552
      %v554 = vrot.slane %v549, %v553
      %v556 = vmul.f32 %v533, %v554
      %v557 = vmul.f32 %v534, %v554
      %v558 = vmul.f32 %v535, %v554
      %v559 = vmul.f32 %v536, %v554
      %v560 = vmul.f32 %v537, %v554
      %v561 = vmul.f32 %v538, %v554
      %v562 = vmul.f32 %v539, %v554
      %v563 = vmul.f32 %v540, %v554
      %v564 = vmul.f32 %v541, %v554
      %v565 = vmul.f32 %v542, %v554
      %v566 = vmul.f32 %v543, %v554
      %v567 = vmul.f32 %v544, %v554
      %v568 = vmul.f32 %v545, %v554
      %v569 = vmul.f32 %v546, %v554
      %v570 = vmul.f32 %v547, %v554
      %v571 = vmul.f32 %v548, %v554
      %v572 = vsub.f32 %v405, %v556
      %v573 = vsub.f32 %v406, %v557
      %v574 = vsub.f32 %v407, %v558
      %v575 = vsub.f32 %v408, %v559
      %v576 = vsub.f32 %v409, %v560
      %v577 = vsub.f32 %v410, %v561
      %v578 = vsub.f32 %v411, %v562
      %v579 = vsub.f32 %v412, %v563
      %v580 = vsub.f32 %v413, %v564
      %v581 = vsub.f32 %v414, %v565
      %v582 = vsub.f32 %v415, %v566
      %v583 = vsub.f32 %v416, %v567
      %v584 = vsub.f32 %v417, %v568
      %v585 = vsub.f32 %v418, %v569
      %v586 = vsub.f32 %v419, %v570
      %v587 = vsub.f32 %v420, %v571
      %588 = vst [vmem:[#allocation3] sm:$0xff] %v572
      %589 = vst [vmem:[#allocation3 + $0x8] sm:$0xff] %v573
      %590 = vst [vmem:[#allocation3 + $0x10] sm:$0xff] %v574
      %591 = vst [vmem:[#allocation3 + $0x18] sm:$0xff] %v575
      %592 = vst [vmem:[#allocation3 + $0x20] sm:$0xff] %v576
      %593 = vst [vmem:[#allocation3 + $0x28] sm:$0xff] %v577
      %594 = vst [vmem:[#allocation3 + $0x30] sm:$0xff] %v578
      %595 = vst [vmem:[#allocation3 + $0x38] sm:$0xff] %v579
      %596 = vst [vmem:[#allocation3 + $0x40] sm:$0xff] %v580
      %597 = vst [vmem:[#allocation3 + $0x48] sm:$0xff] %v581
      %598 = vst [vmem:[#allocation3 + $0x50] sm:$0xff] %v582
      %599 = vst [vmem:[#allocation3 + $0x58] sm:$0xff] %v583
      %600 = vst [vmem:[#allocation3 + $0x60] sm:$0xff] %v584
      %601 = vst [vmem:[#allocation3 + $0x68] sm:$0xff] %v585
      %602 = vst [vmem:[#allocation3 + $0x70] sm:$0xff] %v586
      %603 = vst [vmem:[#allocation3 + $0x78] sm:$0xff] %v587
      %v604 = vld [vmem:[%s6] sm:$0xff]
      %v605 = vld [vmem:[%s6 + $0x8] sm:$0xff]
      %v606 = vld [vmem:[%s6 + $0x10] sm:$0xff]
      %v607 = vld [vmem:[%s6 + $0x18] sm:$0xff]
      %v608 = vld [vmem:[%s6 + $0x20] sm:$0xff]
      %v609 = vld [vmem:[%s6 + $0x28] sm:$0xff]
      %v610 = vld [vmem:[%s6 + $0x30] sm:$0xff]
      %v611 = vld [vmem:[%s6 + $0x38] sm:$0xff]
      %v612 = vld [vmem:[%s6 + $0x40] sm:$0xff]
      %v613 = vld [vmem:[%s6 + $0x48] sm:$0xff]
      %v614 = vld [vmem:[%s6 + $0x50] sm:$0xff]
      %v615 = vld [vmem:[%s6 + $0x58] sm:$0xff]
      %v616 = vld [vmem:[%s6 + $0x60] sm:$0xff]
      %v617 = vld [vmem:[%s6 + $0x68] sm:$0xff]
      %v618 = vld [vmem:[%s6 + $0x70] sm:$0xff]
      %v619 = vld [vmem:[%s6 + $0x78] sm:$0xff]
      %v620 = vmul.f32 %v572, 0.25
      %v621 = vmul.f32 %v573, 0.25
      %v622 = vmul.f32 %v574, 0.25
      %v623 = vmul.f32 %v575, 0.25
      %v624 = vmul.f32 %v576, 0.25
      %v625 = vmul.f32 %v577, 0.25
      %v626 = vmul.f32 %v578, 0.25
      %v627 = vmul.f32 %v579, 0.25
      %v628 = vmul.f32 %v580, 0.25
      %v629 = vmul.f32 %v581, 0.25
      %v630 = vmul.f32 %v582, 0.25
      %v631 = vmul.f32 %v583, 0.25
      %v632 = vmul.f32 %v584, 0.25
      %v633 = vmul.f32 %v585, 0.25
      %v634 = vmul.f32 %v586, 0.25
      %v635 = vmul.f32 %v587, 0.25
      %v636 = vadd.f32 %v604, %v620
      %v637 = vadd.f32 %v605, %v621
      %v638 = vadd.f32 %v606, %v622
      %v639 = vadd.f32 %v607, %v623
      %v640 = vadd.f32 %v608, %v624
      %v641 = vadd.f32 %v609, %v625
      %v642 = vadd.f32 %v610, %v626
      %v643 = vadd.f32 %v611, %v627
      %v644 = vadd.f32 %v612, %v628
      %v645 = vadd.f32 %v613, %v629
      %v646 = vadd.f32 %v614, %v630
      %v647 = vadd.f32 %v615, %v631
      %v648 = vadd.f32 %v616, %v632
      %v649 = vadd.f32 %v617, %v633
      %v650 = vadd.f32 %v618, %v634
      %v651 = vadd.f32 %v619, %v635
      %652 = vst [vmem:[%s8] sm:$0xff] %v636
      %653 = vst [vmem:[%s8 + $0x8] sm:$0xff] %v637
      %654 = vst [vmem:[%s8 + $0x10] sm:$0xff] %v638
      %655 = vst [vmem:[%s8 + $0x18] sm:$0xff] %v639
      %656 = vst [vmem:[%s8 + $0x20] sm:$0xff] %v640
      %657 = vst [vmem:[%s8 + $0x28] sm:$0xff] %v641
      %658 = vst [vmem:[%s8 + $0x30] sm:$0xff] %v642
      %659 = vst [vmem:[%s8 + $0x38] sm:$0xff] %v643
      %660 = vst [vmem:[%s8 + $0x40] sm:$0xff] %v644
      %661 = vst [vmem:[%s8 + $0x48] sm:$0xff] %v645
      %662 = vst [vmem:[%s8 + $0x50] sm:$0xff] %v646
      %663 = vst [vmem:[%s8 + $0x58] sm:$0xff] %v647
      %664 = vst [vmem:[%s8 + $0x60] sm:$0xff] %v648
      %665 = vst [vmem:[%s8 + $0x68] sm:$0xff] %v649
      %666 = vst [vmem:[%s8 + $0x70] sm:$0xff] %v650
      %667 = vst [vmem:[%s8 + $0x78] sm:$0xff] %v651
    $region37: #{poly_conv.5} parent=1 // pred_fallthru
      _
    // Predicated region
    $region38: #{poly_conv.5} parent=1 // pred_check
      _
    $region39: #{poly_conv.5} parent=1 // pred_check_branch
      %669 = sbr.rel (0) target = $region41
    $region40: #{poly_conv.5} parent=1 // pred_region
      %s671 = ssub.s32 2048, 2048
      %672 = vsyncadd [#allocation4], %s671
      %s673 = sshll.u32 [#allocation3], 4
      %s674 = int_to_ptr.vmem [resolvable:$true] %s673
      %679 = dma.vmem_to_hbm [thread:$0]  %s674, 2048, %s7, [#allocation4], 128, 128, 8
    $region41: #{poly_conv.5} parent=1 // pred_fallthru
      _
    // Predicated region
    $region42: #{poly_conv.5} parent=1 // pred_check
      _
    $region43: #{poly_conv.5} parent=1 // pred_check_branch
      %681 = sbr.rel (0) target = $region45
    $region44: #{poly_conv.5} parent=1 // pred_region
      _
    $region45: #{poly_conv.5} parent=1 // pred_fallthru
      _
    // Predicated region
    $region46: #{poly_conv.5} parent=1 // pred_check
      _
    $region47: #{poly_conv.5} parent=1 // pred_check_branch
      %683 = sbr.rel (0) target = $region49
    $region48: #{poly_conv.5} parent=1 // pred_region
      %684 = dma.done [#allocation4], 2048
    $region49: #{poly_conv.5} parent=1 // pred_fallthru
      _
    // Predicated region
    $region50: #{poly_conv.5} parent=1 // pred_check
      _
    $region51: #{poly_conv.5} parent=1 // pred_check_branch
      %686 = sbr.rel (0) target = $region53
    $region52: #{poly_conv.5} parent=1 // pred_region
      _
    $region53: #{poly_conv.5} parent=1 // pred_fallthru
      _
    %687 = vsyncpa [#allocation4], 1

</llo_original>
